<compile_context>
chip_gen: v6e
topology: v6e:2x2x1
jax: 0.10.0
libtpu: 0.0.40
codegen_flags: <defaults>
</compile_context>

<pallas_src>
import jax
import jax.numpy as jnp
from jax.experimental import pallas as pl
from jax.experimental.pallas import tpu as pltpu

P = 128   # padded feature width (sublane axis of the activations); lane 127 unused by real features
TC = 256  # in-kernel sub-chunk width (lanes) -> bounded vreg pressure


def _round_up(x, m):
    return (x + m - 1) // m * m


def _mlp_kernel(x_ref, w_ref, out_ref):
    # x_ref:  (P, TM)    bf16  transposed activations, row P-1 == 1.0 (bias lane)
    # w_ref:  (L, P, P)  bf16  per-layer weights, bias in column P-1, W[P-1,P-1]=1
    # out_ref:(1, TM)    f32   lane-dense prediction row
    n_layers = w_ref.shape[0]
    tm = x_ref.shape[1]
    tc = TC if (tm % TC == 0) else tm
    n_chunks = tm // tc

    def run_chunk(col):
        h = x_ref[:, pl.ds(col, tc)]                       # bf16 (P, tc)
        for i in range(n_layers):                          # static unroll (11 layers)
            acc = jnp.dot(w_ref[i], h,
                          preferred_element_type=jnp.float32)   # f32 (P, tc)
            if i < n_layers - 1:
                # ReLU in f32 (v5e has no bf16 VALU), then back to bf16 for the MXU.
                h = jnp.maximum(acc, 0.0).astype(jnp.bfloat16)
            else:
                h = acc                                    # final layer: no ReLU, stay f32
        out_ref[:, pl.ds(col, tc)] = h[0:1, :]             # lane-dense prediction row

    if n_chunks == 1:
        run_chunk(0)
    else:
        @pl.loop(0, n_chunks)
        def _(c):
            run_chunk(pl.multiple_of(c * tc, tc))


def pack_params(weights, biases):
    """weights[i]: (out_i, in_i) f32 (torch nn.Linear layout); biases[i]: (out_i,) f32.

    Returns a bf16 (L, P, P) slab: W in the top-left, bias in column P-1,
    and a 1 at [P-1, P-1] so the constant-1 activation row survives every layer.
    All padding is exactly zero, so the chained padded matmuls are exact.
    """
    L = len(weights)
    w_aug = jnp.zeros((L, P, P), jnp.float32)
    for i, (w, b) in enumerate(zip(weights, biases)):
        out_i, in_i = w.shape
        w_aug = w_aug.at[i, :out_i, :in_i].set(w)
        w_aug = w_aug.at[i, :out_i, P - 1].set(jnp.reshape(b, (-1,)))
        w_aug = w_aug.at[i, P - 1, P - 1].set(1.0)
    return w_aug.astype(jnp.bfloat16)


def neural_predictor_forward(x, w_aug):
    """x: (B, input_dims) f32. Returns (B,) f32, matching torch.squeeze(y, 1)."""
    B, D = x.shape
    L = w_aug.shape[0]

    # Batch (lane) tiling: big tiles amortize the ~0.35us/grid-step overhead, but
    # keep >=2 grid steps so v7x can shard the grid over its 2 TensorCores.
    B_pad = _round_up(B, 128)
    TM = 128
    for cand in (1024, 512, 256):
        if _round_up(B_pad, cand) // cand >= 2:
            TM = cand
            break
    B_pad = _round_up(B_pad, TM)

    # Transposed, zero-padded, bf16 input; row P-1 is the constant-1 bias lane.
    xt = jnp.zeros((P, B_pad), jnp.float32)
    xt = xt.at[:D, :B].set(jnp.transpose(x).astype(jnp.float32))
    xt = xt.at[P - 1, :].set(1.0)
    xt = xt.astype(jnp.bfloat16)

    flops = 2 * P * P * B_pad * L
    bytes_accessed = xt.size * 2 + w_aug.size * 2 + B_pad * 4

    out = pl.pallas_call(
        _mlp_kernel,
        out_shape=jax.ShapeDtypeStruct((1, B_pad), jnp.float32),
        grid=(B_pad // TM,),
        in_specs=[
            pl.BlockSpec((P, TM), lambda i: (0, i)),
            # Constant block index -> weights stay VMEM-resident across all grid
            # steps; single-buffered since the block never changes.
            pl.BlockSpec((L, P, P), lambda i: (0, 0, 0),
                         pipeline_mode=pl.Buffered(1)),
        ],
        out_specs=pl.BlockSpec((1, TM), lambda i: (0, i)),
        compiler_params=pltpu.CompilerParams(
            dimension_semantics=("parallel",)),  # v7x: split batch over 2 TCs
        cost_estimate=pl.CostEstimate(
            flops=flops, transcendentals=0, bytes_accessed=bytes_accessed),
    )(xt, w_aug)

    return out[0, :B]


def init_params(key, input_dims=25, num_layers=10, layer_width=20):
    """Deterministic init mimicking nn.Linear's U(-1/sqrt(fan_in), +1/sqrt(fan_in)).

    Weights use torch layout (out_features, in_features); biases are (out_features,).
    """
    dims = [input_dims] + [layer_width] * num_layers + [1]
    weights, biases = [], []
    for i in range(len(dims) - 1):
        fan_in, fan_out = dims[i], dims[i + 1]
        key, kw, kb = jax.random.split(key, 3)
        bound = 1.0 / float(fan_in) ** 0.5
        w = jax.random.uniform(kw, (fan_out, fan_in), jnp.float32, -bound, bound)
        b = jax.random.uniform(kb, (fan_out,), jnp.float32, -bound, bound)
        weights.append(w)
        biases.append(b)
    return weights, biases


if __name__ == "__main__":
    key = jax.random.PRNGKey(0)
    kx, kp = jax.random.split(key)

    B, input_dims, num_layers, layer_width = 8, 25, 10, 20
    x = jax.random.normal(kx, (B, input_dims), jnp.float32)
    weights, biases = init_params(kp, input_dims, num_layers, layer_width)
    w_aug = pack_params(weights, biases)

    forward = jax.jit(neural_predictor_forward)
    y = forward(x, w_aug)
    y = jax.block_until_ready(y)

    # Pure-JAX reference matching the kernel's numerics (bf16 weights/biases/inputs,
    # f32 accumulation) for the correctness check.
    h = x.astype(jnp.float32)
    for i, (w, b) in enumerate(zip(weights, biases)):
        h = jnp.dot(h.astype(jnp.bfloat16), w.astype(jnp.bfloat16).T,
                    preferred_element_type=jnp.float32)
        h = h + b.astype(jnp.bfloat16).astype(jnp.float32)[None, :]
        if i < len(weights) - 1:
            h = jnp.maximum(h, 0.0)
    ref = jnp.squeeze(h, axis=1)

    assert y.shape == (B,), y.shape
    err = float(jnp.max(jnp.abs(y - ref)))
    assert jnp.allclose(y, ref, atol=2e-4, rtol=1e-3), err
    print("KERNEL_OK")
</pallas_src>

<mosaic_0001>
module attributes {stable_mosaic.version = 11 : i64} {
  func.func @_mlp_kernel(%arg0: i32, %arg1: memref<128x128xbf16, #tpu.memory_space<vmem>>, %arg2: memref<11x128x128xbf16, #tpu.memory_space<vmem>>, %arg3: memref<1x128xf32, #tpu.memory_space<vmem>>) attributes {dimension_semantics = [#tpu.dimension_semantics<parallel>], iteration_bounds = array<i64: 1>, scalar_prefetch = 0 : i64, scratch_operands = 0 : i64, tpu.core_type = #tpu.core_type<tc>, window_params = [{transform_indices = @transform_0, window_bounds = array<i64: 128, 128>}, {pipeline_mode = #tpu.pipeline_mode<synchronous>, transform_indices = @transform_1, window_bounds = array<i64: 11, 128, 128>}, {transform_indices = @transform_2, window_bounds = array<i64: 1, 128>}]} {
    %c0 = arith.constant 0 : index
    %c0_0 = arith.constant 0 : index
    %0 = vector.load %arg1[%c0, %c0_0] : memref<128x128xbf16, #tpu.memory_space<vmem>>, vector<128x128xbf16>
    %c0_1 = arith.constant 0 : index
    %c0_2 = arith.constant 0 : index
    %c0_3 = arith.constant 0 : index
    %1 = vector.load %arg2[%c0_1, %c0_2, %c0_3] : memref<11x128x128xbf16, #tpu.memory_space<vmem>>, vector<1x128x128xbf16>
    %2 = vector.shape_cast %1 : vector<1x128x128xbf16> to vector<128x128xbf16>
    %cst = arith.constant dense<0.000000e+00> : vector<128x128xf32>
    %3 = tpu.matmul %2, %0, %cst {dimension_numbers = #tpu.dot_dimension_numbers<[1], [0], [0], [1], [0, 0, 1, 1], [], []>} : vector<128x128xbf16>, vector<128x128xbf16>, vector<128x128xf32> -> vector<128x128xf32>
    %cst_4 = arith.constant 0.000000e+00 : f32
    %4 = vector.broadcast %cst_4 : f32 to vector<128x128xf32>
    %5 = arith.maximumf %3, %4 : vector<128x128xf32>
    %6 = arith.truncf %5 : vector<128x128xf32> to vector<128x128xbf16>
    %c1 = arith.constant 1 : index
    %c0_5 = arith.constant 0 : index
    %c0_6 = arith.constant 0 : index
    %7 = vector.load %arg2[%c1, %c0_5, %c0_6] : memref<11x128x128xbf16, #tpu.memory_space<vmem>>, vector<1x128x128xbf16>
    %8 = vector.shape_cast %7 : vector<1x128x128xbf16> to vector<128x128xbf16>
    %cst_7 = arith.constant dense<0.000000e+00> : vector<128x128xf32>
    %9 = tpu.matmul %8, %6, %cst_7 {dimension_numbers = #tpu.dot_dimension_numbers<[1], [0], [0], [1], [0, 0, 1, 1], [], []>} : vector<128x128xbf16>, vector<128x128xbf16>, vector<128x128xf32> -> vector<128x128xf32>
    %cst_8 = arith.constant 0.000000e+00 : f32
    %10 = vector.broadcast %cst_8 : f32 to vector<128x128xf32>
    %11 = arith.maximumf %9, %10 : vector<128x128xf32>
    %12 = arith.truncf %11 : vector<128x128xf32> to vector<128x128xbf16>
    %c2 = arith.constant 2 : index
    %c0_9 = arith.constant 0 : index
    %c0_10 = arith.constant 0 : index
    %13 = vector.load %arg2[%c2, %c0_9, %c0_10] : memref<11x128x128xbf16, #tpu.memory_space<vmem>>, vector<1x128x128xbf16>
    %14 = vector.shape_cast %13 : vector<1x128x128xbf16> to vector<128x128xbf16>
    %cst_11 = arith.constant dense<0.000000e+00> : vector<128x128xf32>
    %15 = tpu.matmul %14, %12, %cst_11 {dimension_numbers = #tpu.dot_dimension_numbers<[1], [0], [0], [1], [0, 0, 1, 1], [], []>} : vector<128x128xbf16>, vector<128x128xbf16>, vector<128x128xf32> -> vector<128x128xf32>
    %cst_12 = arith.constant 0.000000e+00 : f32
    %16 = vector.broadcast %cst_12 : f32 to vector<128x128xf32>
    %17 = arith.maximumf %15, %16 : vector<128x128xf32>
    %18 = arith.truncf %17 : vector<128x128xf32> to vector<128x128xbf16>
    %c3 = arith.constant 3 : index
    %c0_13 = arith.constant 0 : index
    %c0_14 = arith.constant 0 : index
    %19 = vector.load %arg2[%c3, %c0_13, %c0_14] : memref<11x128x128xbf16, #tpu.memory_space<vmem>>, vector<1x128x128xbf16>
    %20 = vector.shape_cast %19 : vector<1x128x128xbf16> to vector<128x128xbf16>
    %cst_15 = arith.constant dense<0.000000e+00> : vector<128x128xf32>
    %21 = tpu.matmul %20, %18, %cst_15 {dimension_numbers = #tpu.dot_dimension_numbers<[1], [0], [0], [1], [0, 0, 1, 1], [], []>} : vector<128x128xbf16>, vector<128x128xbf16>, vector<128x128xf32> -> vector<128x128xf32>
    %cst_16 = arith.constant 0.000000e+00 : f32
    %22 = vector.broadcast %cst_16 : f32 to vector<128x128xf32>
    %23 = arith.maximumf %21, %22 : vector<128x128xf32>
    %24 = arith.truncf %23 : vector<128x128xf32> to vector<128x128xbf16>
    %c4 = arith.constant 4 : index
    %c0_17 = arith.constant 0 : index
    %c0_18 = arith.constant 0 : index
    %25 = vector.load %arg2[%c4, %c0_17, %c0_18] : memref<11x128x128xbf16, #tpu.memory_space<vmem>>, vector<1x128x128xbf16>
    %26 = vector.shape_cast %25 : vector<1x128x128xbf16> to vector<128x128xbf16>
    %cst_19 = arith.constant dense<0.000000e+00> : vector<128x128xf32>
    %27 = tpu.matmul %26, %24, %cst_19 {dimension_numbers = #tpu.dot_dimension_numbers<[1], [0], [0], [1], [0, 0, 1, 1], [], []>} : vector<128x128xbf16>, vector<128x128xbf16>, vector<128x128xf32> -> vector<128x128xf32>
    %cst_20 = arith.constant 0.000000e+00 : f32
    %28 = vector.broadcast %cst_20 : f32 to vector<128x128xf32>
    %29 = arith.maximumf %27, %28 : vector<128x128xf32>
    %30 = arith.truncf %29 : vector<128x128xf32> to vector<128x128xbf16>
    %c5 = arith.constant 5 : index
    %c0_21 = arith.constant 0 : index
    %c0_22 = arith.constant 0 : index
    %31 = vector.load %arg2[%c5, %c0_21, %c0_22] : memref<11x128x128xbf16, #tpu.memory_space<vmem>>, vector<1x128x128xbf16>
    %32 = vector.shape_cast %31 : vector<1x128x128xbf16> to vector<128x128xbf16>
    %cst_23 = arith.constant dense<0.000000e+00> : vector<128x128xf32>
    %33 = tpu.matmul %32, %30, %cst_23 {dimension_numbers = #tpu.dot_dimension_numbers<[1], [0], [0], [1], [0, 0, 1, 1], [], []>} : vector<128x128xbf16>, vector<128x128xbf16>, vector<128x128xf32> -> vector<128x128xf32>
    %cst_24 = arith.constant 0.000000e+00 : f32
    %34 = vector.broadcast %cst_24 : f32 to vector<128x128xf32>
    %35 = arith.maximumf %33, %34 : vector<128x128xf32>
    %36 = arith.truncf %35 : vector<128x128xf32> to vector<128x128xbf16>
    %c6 = arith.constant 6 : index
    %c0_25 = arith.constant 0 : index
    %c0_26 = arith.constant 0 : index
    %37 = vector.load %arg2[%c6, %c0_25, %c0_26] : memref<11x128x128xbf16, #tpu.memory_space<vmem>>, vector<1x128x128xbf16>
    %38 = vector.shape_cast %37 : vector<1x128x128xbf16> to vector<128x128xbf16>
    %cst_27 = arith.constant dense<0.000000e+00> : vector<128x128xf32>
    %39 = tpu.matmul %38, %36, %cst_27 {dimension_numbers = #tpu.dot_dimension_numbers<[1], [0], [0], [1], [0, 0, 1, 1], [], []>} : vector<128x128xbf16>, vector<128x128xbf16>, vector<128x128xf32> -> vector<128x128xf32>
    %cst_28 = arith.constant 0.000000e+00 : f32
    %40 = vector.broadcast %cst_28 : f32 to vector<128x128xf32>
    %41 = arith.maximumf %39, %40 : vector<128x128xf32>
    %42 = arith.truncf %41 : vector<128x128xf32> to vector<128x128xbf16>
    %c7 = arith.constant 7 : index
    %c0_29 = arith.constant 0 : index
    %c0_30 = arith.constant 0 : index
    %43 = vector.load %arg2[%c7, %c0_29, %c0_30] : memref<11x128x128xbf16, #tpu.memory_space<vmem>>, vector<1x128x128xbf16>
    %44 = vector.shape_cast %43 : vector<1x128x128xbf16> to vector<128x128xbf16>
    %cst_31 = arith.constant dense<0.000000e+00> : vector<128x128xf32>
    %45 = tpu.matmul %44, %42, %cst_31 {dimension_numbers = #tpu.dot_dimension_numbers<[1], [0], [0], [1], [0, 0, 1, 1], [], []>} : vector<128x128xbf16>, vector<128x128xbf16>, vector<128x128xf32> -> vector<128x128xf32>
    %cst_32 = arith.constant 0.000000e+00 : f32
    %46 = vector.broadcast %cst_32 : f32 to vector<128x128xf32>
    %47 = arith.maximumf %45, %46 : vector<128x128xf32>
    %48 = arith.truncf %47 : vector<128x128xf32> to vector<128x128xbf16>
    %c8 = arith.constant 8 : index
    %c0_33 = arith.constant 0 : index
    %c0_34 = arith.constant 0 : index
    %49 = vector.load %arg2[%c8, %c0_33, %c0_34] : memref<11x128x128xbf16, #tpu.memory_space<vmem>>, vector<1x128x128xbf16>
    %50 = vector.shape_cast %49 : vector<1x128x128xbf16> to vector<128x128xbf16>
    %cst_35 = arith.constant dense<0.000000e+00> : vector<128x128xf32>
    %51 = tpu.matmul %50, %48, %cst_35 {dimension_numbers = #tpu.dot_dimension_numbers<[1], [0], [0], [1], [0, 0, 1, 1], [], []>} : vector<128x128xbf16>, vector<128x128xbf16>, vector<128x128xf32> -> vector<128x128xf32>
    %cst_36 = arith.constant 0.000000e+00 : f32
    %52 = vector.broadcast %cst_36 : f32 to vector<128x128xf32>
    %53 = arith.maximumf %51, %52 : vector<128x128xf32>
    %54 = arith.truncf %53 : vector<128x128xf32> to vector<128x128xbf16>
    %c9 = arith.constant 9 : index
    %c0_37 = arith.constant 0 : index
    %c0_38 = arith.constant 0 : index
    %55 = vector.load %arg2[%c9, %c0_37, %c0_38] : memref<11x128x128xbf16, #tpu.memory_space<vmem>>, vector<1x128x128xbf16>
    %56 = vector.shape_cast %55 : vector<1x128x128xbf16> to vector<128x128xbf16>
    %cst_39 = arith.constant dense<0.000000e+00> : vector<128x128xf32>
    %57 = tpu.matmul %56, %54, %cst_39 {dimension_numbers = #tpu.dot_dimension_numbers<[1], [0], [0], [1], [0, 0, 1, 1], [], []>} : vector<128x128xbf16>, vector<128x128xbf16>, vector<128x128xf32> -> vector<128x128xf32>
    %cst_40 = arith.constant 0.000000e+00 : f32
    %58 = vector.broadcast %cst_40 : f32 to vector<128x128xf32>
    %59 = arith.maximumf %57, %58 : vector<128x128xf32>
    %60 = arith.truncf %59 : vector<128x128xf32> to vector<128x128xbf16>
    %c10 = arith.constant 10 : index
    %c0_41 = arith.constant 0 : index
    %c0_42 = arith.constant 0 : index
    %61 = vector.load %arg2[%c10, %c0_41, %c0_42] : memref<11x128x128xbf16, #tpu.memory_space<vmem>>, vector<1x128x128xbf16>
    %62 = vector.shape_cast %61 : vector<1x128x128xbf16> to vector<128x128xbf16>
    %cst_43 = arith.constant dense<0.000000e+00> : vector<128x128xf32>
    %63 = tpu.matmul %62, %60, %cst_43 {dimension_numbers = #tpu.dot_dimension_numbers<[1], [0], [0], [1], [0, 0, 1, 1], [], []>} : vector<128x128xbf16>, vector<128x128xbf16>, vector<128x128xf32> -> vector<128x128xf32>
    %64 = vector.extract_strided_slice %63 {offsets = [0, 0], sizes = [1, 128], strides = [1, 1]} : vector<128x128xf32> to vector<1x128xf32>
    %c0_44 = arith.constant 0 : index
    %c0_45 = arith.constant 0 : index
    %65 = vector.load %arg3[%c0_44, %c0_45] : memref<1x128xf32, #tpu.memory_space<vmem>>, vector<1x128xf32>
    tpu.vector_store %arg3[%c0_44, %c0_45], %64 {strides = array<i32>} : memref<1x128xf32, #tpu.memory_space<vmem>>, vector<1x128xf32>,
    return
  }
  func.func @transform_0(%arg0: i32) -> (i32, i32) {
    %c0_i32 = arith.constant 0 : i32
    %c0_i32_0 = arith.constant 0 : i32
    return %c0_i32, %arg0 : i32, i32
  }
  func.func @transform_1(%arg0: i32) -> (i32, i32, i32) {
    %c0_i32 = arith.constant 0 : i32
    %c0_i32_0 = arith.constant 0 : i32
    %c0_i32_1 = arith.constant 0 : i32
    %c0_i32_2 = arith.constant 0 : i32
    return %c0_i32, %c0_i32_0, %c0_i32_1 : i32, i32, i32
  }
  func.func @transform_2(%arg0: i32) -> (i32, i32) {
    %c0_i32 = arith.constant 0 : i32
    %c0_i32_0 = arith.constant 0 : i32
    return %c0_i32, %arg0 : i32, i32
  }
}

</mosaic_0001>

<llo_original>
// kernel: neural_predictor_forward.1
$region0: #{neural_predictor_forward.1}
  #allocation0 [shape = 'u32[]', space=smem, size = 0x4, offset = 0x4, fixed_abs, tag = 'smem constant byte address 0x4 - core index']
  #allocation1 [shape = 'u32[144,128]{1,0:T(1,128)}', space=vmem, size = 0x12000, scoped, tag = 'internal scratch']
  %s0 = inlined_call_operand.vmem [shape: bf16[128,128], index: 0, kind: input, shape index: {}]
  %s1 = inlined_call_operand.hbm [shape: bf16[11,128,128], index: 1, kind: input, shape index: {}]
  %s2 = inlined_call_operand.vmem [shape: f32[1,128], index: 2, kind: output, shape index: {}]
  %s3 = sld [smem:[#allocation0]]
  $region22: #{neural_predictor_forward.1} parent=0
    _
  %s5 = ssub.s32 1, %s3
  %s6 = scalar_select 0, %s5, %s3
  $region1: #{neural_predictor_forward.1} parent=0
    #allocation2 [shape = 'u8[360448]{0}', space=vmem, size = 0x58000, scoped, tag = 'input window, operand 1, single buffered']
    #allocation3 [shape = 's32[1]{0}', space=sflag, size = 0x4, scoped, tag = 'scoped memory for neural_predictor_forward.1']
    %7 = vsyncpa [#allocation3], 0
    // Predicated region
    $region2: #{neural_predictor_forward.1} parent=1 // pred_check
      _
    $region3: #{neural_predictor_forward.1} parent=1 // pred_check_branch
      %9 = sbr.rel (0) target = $region5
    $region4: #{neural_predictor_forward.1} parent=1 // pred_region
      _
    $region5: #{neural_predictor_forward.1} parent=1 // pred_fallthru
      _
    // Predicated region
    $region6: #{neural_predictor_forward.1} parent=1 // pred_check
      _
    $region7: #{neural_predictor_forward.1} parent=1 // pred_check_branch
      %11 = sbr.rel (0) target = $region9
    $region8: #{neural_predictor_forward.1} parent=1 // pred_region
      %s13 = ssub.s32 11264, 11264
      %14 = vsyncadd [#allocation3], %s13
      %s15 = sshll.u32 [#allocation2], 4
      %s16 = int_to_ptr.vmem [resolvable:$true] %s15
      %21 = dma.hbm_to_vmem [thread:$0]  %s1, 11264, %s16, [#allocation3], 64, 64, 4
    $region9: #{neural_predictor_forward.1} parent=1 // pred_fallthru
      _
    // Predicated region
    $region10: #{neural_predictor_forward.1} parent=1 // pred_check
      _
    $region11: #{neural_predictor_forward.1} parent=1 // pred_check_branch
      %23 = sbr.rel (0) target = $region13
    $region12: #{neural_predictor_forward.1} parent=1 // pred_region
      %24 = dma.done [#allocation3], 11264
    $region13: #{neural_predictor_forward.1} parent=1 // pred_fallthru
      _
    %v26 = vld [vmem:[%s0] sm:$0xf]
    %v27 = vld [vmem:[%s0 + $0x4] sm:$0xf]
    %v28 = vld [vmem:[%s0 + $0x8] sm:$0xf]
    %v29 = vld [vmem:[%s0 + $0xc] sm:$0xf]
    %v30 = vld [vmem:[%s0 + $0x10] sm:$0xf]
    %v31 = vld [vmem:[%s0 + $0x14] sm:$0xf]
    %v32 = vld [vmem:[%s0 + $0x18] sm:$0xf]
    %v33 = vld [vmem:[%s0 + $0x1c] sm:$0xf]
    %v34 = vld [vmem:[%s0 + $0x20] sm:$0xf]
    %v35 = vld [vmem:[%s0 + $0x24] sm:$0xf]
    %v36 = vld [vmem:[%s0 + $0x28] sm:$0xf]
    %v37 = vld [vmem:[%s0 + $0x2c] sm:$0xf]
    %v38 = vld [vmem:[%s0 + $0x30] sm:$0xf]
    %v39 = vld [vmem:[%s0 + $0x34] sm:$0xf]
    %v40 = vld [vmem:[%s0 + $0x38] sm:$0xf]
    %v41 = vld [vmem:[%s0 + $0x3c] sm:$0xf]
    %v42 = vld [vmem:[#allocation2] sm:$0xf]
    %v43 = vld [vmem:[#allocation2 + $0x4] sm:$0xf]
    %v44 = vld [vmem:[#allocation2 + $0x8] sm:$0xf]
    %v45 = vld [vmem:[#allocation2 + $0xc] sm:$0xf]
    %v46 = vld [vmem:[#allocation2 + $0x10] sm:$0xf]
    %v47 = vld [vmem:[#allocation2 + $0x14] sm:$0xf]
    %v48 = vld [vmem:[#allocation2 + $0x18] sm:$0xf]
    %v49 = vld [vmem:[#allocation2 + $0x1c] sm:$0xf]
    %v50 = vld [vmem:[#allocation2 + $0x20] sm:$0xf]
    %v51 = vld [vmem:[#allocation2 + $0x24] sm:$0xf]
    %v52 = vld [vmem:[#allocation2 + $0x28] sm:$0xf]
    %v53 = vld [vmem:[#allocation2 + $0x2c] sm:$0xf]
    %v54 = vld [vmem:[#allocation2 + $0x30] sm:$0xf]
    %v55 = vld [vmem:[#allocation2 + $0x34] sm:$0xf]
    %v56 = vld [vmem:[#allocation2 + $0x38] sm:$0xf]
    %v57 = vld [vmem:[#allocation2 + $0x3c] sm:$0xf]
    %v74 = vunpack.c.l.b16 %v42
    %v75 = vunpack.c.l.b16 %v43
    %v76 = vunpack.c.l.b16 %v44
    %v77 = vunpack.c.l.b16 %v45
    %v78 = vunpack.c.l.b16 %v46
    %v79 = vunpack.c.l.b16 %v47
    %v80 = vunpack.c.l.b16 %v48
    %v81 = vunpack.c.l.b16 %v49
    %v82 = vunpack.c.l.b16 %v50
    %v83 = vunpack.c.l.b16 %v51
    %v84 = vunpack.c.l.b16 %v52
    %v85 = vunpack.c.l.b16 %v53
    %v86 = vunpack.c.l.b16 %v54
    %v87 = vunpack.c.l.b16 %v55
    %v88 = vunpack.c.l.b16 %v56
    %v89 = vunpack.c.l.b16 %v57
    %v90 = vpack.c.b16 %v75, %v74
    %v91 = vpack.c.b16 %v77, %v76
    %v92 = vpack.c.b16 %v79, %v78
    %v93 = vpack.c.b16 %v81, %v80
    %v94 = vpack.c.b16 %v83, %v82
    %v95 = vpack.c.b16 %v85, %v84
    %v96 = vpack.c.b16 %v87, %v86
    %v97 = vpack.c.b16 %v89, %v88
    %v122 = vunpack.c.l.b16 %v26
    %v123 = vunpack.c.l.b16 %v27
    %v124 = vunpack.c.l.b16 %v28
    %v125 = vunpack.c.l.b16 %v29
    %v126 = vunpack.c.l.b16 %v30
    %v127 = vunpack.c.l.b16 %v31
    %v128 = vunpack.c.l.b16 %v32
    %v129 = vunpack.c.l.b16 %v33
    %v130 = vunpack.c.l.b16 %v34
    %v131 = vunpack.c.l.b16 %v35
    %v132 = vunpack.c.l.b16 %v36
    %v133 = vunpack.c.l.b16 %v37
    %v134 = vunpack.c.l.b16 %v38
    %v135 = vunpack.c.l.b16 %v39
    %v136 = vunpack.c.l.b16 %v40
    %v137 = vunpack.c.l.b16 %v41
    %v138 = vpack.c.b16 %v123, %v122
    %v139 = vpack.c.b16 %v125, %v124
    %v140 = vpack.c.b16 %v127, %v126
    %v141 = vpack.c.b16 %v129, %v128
    %v142 = vpack.c.b16 %v131, %v130
    %v143 = vpack.c.b16 %v133, %v132
    %v144 = vpack.c.b16 %v135, %v134
    %v145 = vpack.c.b16 %v137, %v136
    %154 = vmatprep.subr.bf16.mxu0 0
    %155 = vmatpush1.bf16.msra.mxu0 %v145
    %156 = vmatprep.subr.bf16.mxu0 0
    %157 = vmatpush1.bf16.msra.mxu0 %v144
    %158 = vmatprep.subr.bf16.mxu0 0
    %159 = vmatpush1.bf16.msra.mxu0 %v143
    %160 = vmatprep.subr.bf16.mxu0 0
    %161 = vmatpush1.bf16.msra.mxu0 %v142
    %162 = vmatprep.subr.bf16.mxu0 0
    %163 = vmatpush1.bf16.msra.mxu0 %v141
    %164 = vmatprep.subr.bf16.mxu0 0
    %165 = vmatpush1.bf16.msra.mxu0 %v140
    %166 = vmatprep.subr.bf16.mxu0 0
    %167 = vmatpush1.bf16.msra.mxu0 %v139
    %168 = vmatprep.subr.bf16.mxu0 0
    %169 = vmatpush1.bf16.msra.mxu0 %v138
    %170 = vmatprep.subr.bf16.mxu0 0
    %171 = vmatpush2.bf16.msra.mxu0 0
    %172 = vmatprep.subr.bf16.mxu0 0
    %173 = vmatpush2.bf16.msra.mxu0 0
    %174 = vmatprep.subr.bf16.mxu0 0
    %175 = vmatpush2.bf16.msra.mxu0 0
    %176 = vmatprep.subr.bf16.mxu0 0
    %177 = vmatpush2.bf16.msra.mxu0 0
    %178 = vmatprep.subr.bf16.mxu0 0
    %179 = vmatpush2.bf16.msra.mxu0 0
    %180 = vmatprep.subr.bf16.mxu0 0
    %181 = vmatpush2.bf16.msra.mxu0 0
    %182 = vmatprep.subr.bf16.mxu0 0
    %183 = vmatpush2.bf16.msra.mxu0 0
    %184 = vmatprep.subr.bf16.mxu0 0
    %185 = vmatpush2.bf16.msra.mxu0 0
    %186 = vmatprep.mubr.bf16.mxu0 0
    %187 = vmatmul.mubr.bf16.gmra.mxu0 %v90
    %v188 = vpop.f32.mrf.mxu0
    %v189 = vadd.f32 0.0, %v188
    %v190 = vpop.f32.mrf.mxu0
    %v191 = vpop.f32.mrf.mxu0
    %v192 = vadd.f32 0.0, %v191
    %v193 = vpop.f32.mrf.mxu0
    %194 = vmatprep.mubr.bf16.mxu0 0
    %195 = vmatmul.mubr.bf16.gmra.mxu0 %v91
    %v196 = vpop.f32.mrf.mxu0
    %v197 = vadd.f32 0.0, %v196
    %v198 = vpop.f32.mrf.mxu0
    %v199 = vpop.f32.mrf.mxu0
    %v200 = vadd.f32 0.0, %v199
    %v201 = vpop.f32.mrf.mxu0
    %202 = vmatprep.mubr.bf16.mxu0 0
    %203 = vmatmul.mubr.bf16.gmra.mxu0 %v92
    %v204 = vpop.f32.mrf.mxu0
    %v205 = vadd.f32 0.0, %v204
    %v206 = vpop.f32.mrf.mxu0
    %v207 = vpop.f32.mrf.mxu0
    %v208 = vadd.f32 0.0, %v207
    %v209 = vpop.f32.mrf.mxu0
    %210 = vmatprep.mubr.bf16.mxu0 0
    %211 = vmatmul.mubr.bf16.gmra.mxu0 %v93
    %v212 = vpop.f32.mrf.mxu0
    %v213 = vadd.f32 0.0, %v212
    %v214 = vpop.f32.mrf.mxu0
    %v215 = vpop.f32.mrf.mxu0
    %v216 = vadd.f32 0.0, %v215
    %v217 = vpop.f32.mrf.mxu0
    %218 = vmatprep.mubr.bf16.mxu0 0
    %219 = vmatmul.mubr.bf16.gmra.mxu0 %v94
    %v220 = vpop.f32.mrf.mxu0
    %v221 = vadd.f32 0.0, %v220
    %v222 = vpop.f32.mrf.mxu0
    %v223 = vpop.f32.mrf.mxu0
    %v224 = vadd.f32 0.0, %v223
    %v225 = vpop.f32.mrf.mxu0
    %226 = vmatprep.mubr.bf16.mxu0 0
    %227 = vmatmul.mubr.bf16.gmra.mxu0 %v95
    %v228 = vpop.f32.mrf.mxu0
    %v229 = vadd.f32 0.0, %v228
    %v230 = vpop.f32.mrf.mxu0
    %v231 = vpop.f32.mrf.mxu0
    %v232 = vadd.f32 0.0, %v231
    %v233 = vpop.f32.mrf.mxu0
    %234 = vmatprep.mubr.bf16.mxu0 0
    %235 = vmatmul.mubr.bf16.gmra.mxu0 %v96
    %v236 = vpop.f32.mrf.mxu0
    %v237 = vadd.f32 0.0, %v236
    %v238 = vpop.f32.mrf.mxu0
    %v239 = vpop.f32.mrf.mxu0
    %v240 = vadd.f32 0.0, %v239
    %v241 = vpop.f32.mrf.mxu0
    %242 = vmatprep.mubr.bf16.mxu0 0
    %243 = vmatmul.mubr.bf16.gmra.mxu0 %v97
    %v244 = vpop.f32.mrf.mxu0
    %v245 = vadd.f32 0.0, %v244
    %v246 = vpop.f32.mrf.mxu0
    %v247 = vpop.f32.mrf.mxu0
    %v248 = vadd.f32 0.0, %v247
    %v249 = vpop.f32.mrf.mxu0
    %250 = vdwg.mxu0
    %v251 = vmax.f32 %v189, 0.0
    %v252 = vmax.f32 %v192, 0.0
    %v253 = vmax.f32 %v197, 0.0
    %v254 = vmax.f32 %v200, 0.0
    %v255 = vmax.f32 %v205, 0.0
    %v256 = vmax.f32 %v208, 0.0
    %v257 = vmax.f32 %v213, 0.0
    %v258 = vmax.f32 %v216, 0.0
    %v259 = vmax.f32 %v221, 0.0
    %v260 = vmax.f32 %v224, 0.0
    %v261 = vmax.f32 %v229, 0.0
    %v262 = vmax.f32 %v232, 0.0
    %v263 = vmax.f32 %v237, 0.0
    %v264 = vmax.f32 %v240, 0.0
    %v265 = vmax.f32 %v245, 0.0
    %v266 = vmax.f32 %v248, 0.0
    %v267 = vpack.c.bf16 %v252, %v251
    %v268 = vpack.c.bf16 %v254, %v253
    %v269 = vpack.c.bf16 %v256, %v255
    %v270 = vpack.c.bf16 %v258, %v257
    %v271 = vpack.c.bf16 %v260, %v259
    %v272 = vpack.c.bf16 %v262, %v261
    %v273 = vpack.c.bf16 %v264, %v263
    %v274 = vpack.c.bf16 %v266, %v265
    %s275 = scalar_lea.vmem [#allocation2], 64
    %v276 = vld [vmem:[%s275] sm:$0xf]
    %v277 = vld [vmem:[%s275 + $0x4] sm:$0xf]
    %v278 = vld [vmem:[%s275 + $0x8] sm:$0xf]
    %v279 = vld [vmem:[%s275 + $0xc] sm:$0xf]
    %v280 = vld [vmem:[%s275 + $0x10] sm:$0xf]
    %v281 = vld [vmem:[%s275 + $0x14] sm:$0xf]
    %v282 = vld [vmem:[%s275 + $0x18] sm:$0xf]
    %v283 = vld [vmem:[%s275 + $0x1c] sm:$0xf]
    %v284 = vld [vmem:[%s275 + $0x20] sm:$0xf]
    %v285 = vld [vmem:[%s275 + $0x24] sm:$0xf]
    %v286 = vld [vmem:[%s275 + $0x28] sm:$0xf]
    %v287 = vld [vmem:[%s275 + $0x2c] sm:$0xf]
    %v288 = vld [vmem:[%s275 + $0x30] sm:$0xf]
    %v289 = vld [vmem:[%s275 + $0x34] sm:$0xf]
    %v290 = vld [vmem:[%s275 + $0x38] sm:$0xf]
    %v291 = vld [vmem:[%s275 + $0x3c] sm:$0xf]
    %v308 = vunpack.c.l.b16 %v276
    %v309 = vunpack.c.l.b16 %v277
    %v310 = vunpack.c.l.b16 %v278
    %v311 = vunpack.c.l.b16 %v279
    %v312 = vunpack.c.l.b16 %v280
    %v313 = vunpack.c.l.b16 %v281
    %v314 = vunpack.c.l.b16 %v282
    %v315 = vunpack.c.l.b16 %v283
    %v316 = vunpack.c.l.b16 %v284
    %v317 = vunpack.c.l.b16 %v285
    %v318 = vunpack.c.l.b16 %v286
    %v319 = vunpack.c.l.b16 %v287
    %v320 = vunpack.c.l.b16 %v288
    %v321 = vunpack.c.l.b16 %v289
    %v322 = vunpack.c.l.b16 %v290
    %v323 = vunpack.c.l.b16 %v291
    %v324 = vpack.c.b16 %v309, %v308
    %v325 = vpack.c.b16 %v311, %v310
    %v326 = vpack.c.b16 %v313, %v312
    %v327 = vpack.c.b16 %v315, %v314
    %v328 = vpack.c.b16 %v317, %v316
    %v329 = vpack.c.b16 %v319, %v318
    %v330 = vpack.c.b16 %v321, %v320
    %v331 = vpack.c.b16 %v323, %v322
    %340 = vmatprep.subr.bf16.mxu0 0
    %341 = vmatpush1.bf16.msra.mxu0 %v274
    %342 = vmatprep.subr.bf16.mxu0 0
    %343 = vmatpush1.bf16.msra.mxu0 %v273
    %344 = vmatprep.subr.bf16.mxu0 0
    %345 = vmatpush1.bf16.msra.mxu0 %v272
    %346 = vmatprep.subr.bf16.mxu0 0
    %347 = vmatpush1.bf16.msra.mxu0 %v271
    %348 = vmatprep.subr.bf16.mxu0 0
    %349 = vmatpush1.bf16.msra.mxu0 %v270
    %350 = vmatprep.subr.bf16.mxu0 0
    %351 = vmatpush1.bf16.msra.mxu0 %v269
    %352 = vmatprep.subr.bf16.mxu0 0
    %353 = vmatpush1.bf16.msra.mxu0 %v268
    %354 = vmatprep.subr.bf16.mxu0 0
    %355 = vmatpush1.bf16.msra.mxu0 %v267
    %356 = vmatprep.subr.bf16.mxu0 0
    %357 = vmatpush2.bf16.msra.mxu0 0
    %358 = vmatprep.subr.bf16.mxu0 0
    %359 = vmatpush2.bf16.msra.mxu0 0
    %360 = vmatprep.subr.bf16.mxu0 0
    %361 = vmatpush2.bf16.msra.mxu0 0
    %362 = vmatprep.subr.bf16.mxu0 0
    %363 = vmatpush2.bf16.msra.mxu0 0
    %364 = vmatprep.subr.bf16.mxu0 0
    %365 = vmatpush2.bf16.msra.mxu0 0
    %366 = vmatprep.subr.bf16.mxu0 0
    %367 = vmatpush2.bf16.msra.mxu0 0
    %368 = vmatprep.subr.bf16.mxu0 0
    %369 = vmatpush2.bf16.msra.mxu0 0
    %370 = vmatprep.subr.bf16.mxu0 0
    %371 = vmatpush2.bf16.msra.mxu0 0
    %372 = vmatprep.mubr.bf16.mxu0 0
    %373 = vmatmul.mubr.bf16.gmra.mxu0 %v324
    %v374 = vpop.f32.mrf.mxu0
    %v375 = vadd.f32 0.0, %v374
    %v376 = vpop.f32.mrf.mxu0
    %v377 = vpop.f32.mrf.mxu0
    %v378 = vadd.f32 0.0, %v377
    %v379 = vpop.f32.mrf.mxu0
    %380 = vmatprep.mubr.bf16.mxu0 0
    %381 = vmatmul.mubr.bf16.gmra.mxu0 %v325
    %v382 = vpop.f32.mrf.mxu0
    %v383 = vadd.f32 0.0, %v382
    %v384 = vpop.f32.mrf.mxu0
    %v385 = vpop.f32.mrf.mxu0
    %v386 = vadd.f32 0.0, %v385
    %v387 = vpop.f32.mrf.mxu0
    %388 = vmatprep.mubr.bf16.mxu0 0
    %389 = vmatmul.mubr.bf16.gmra.mxu0 %v326
    %v390 = vpop.f32.mrf.mxu0
    %v391 = vadd.f32 0.0, %v390
    %v392 = vpop.f32.mrf.mxu0
    %v393 = vpop.f32.mrf.mxu0
    %v394 = vadd.f32 0.0, %v393
    %v395 = vpop.f32.mrf.mxu0
    %396 = vmatprep.mubr.bf16.mxu0 0
    %397 = vmatmul.mubr.bf16.gmra.mxu0 %v327
    %v398 = vpop.f32.mrf.mxu0
    %v399 = vadd.f32 0.0, %v398
    %v400 = vpop.f32.mrf.mxu0
    %v401 = vpop.f32.mrf.mxu0
    %v402 = vadd.f32 0.0, %v401
    %v403 = vpop.f32.mrf.mxu0
    %404 = vmatprep.mubr.bf16.mxu0 0
    %405 = vmatmul.mubr.bf16.gmra.mxu0 %v328
    %v406 = vpop.f32.mrf.mxu0
    %v407 = vadd.f32 0.0, %v406
    %v408 = vpop.f32.mrf.mxu0
    %v409 = vpop.f32.mrf.mxu0
    %v410 = vadd.f32 0.0, %v409
    %v411 = vpop.f32.mrf.mxu0
    %412 = vmatprep.mubr.bf16.mxu0 0
    %413 = vmatmul.mubr.bf16.gmra.mxu0 %v329
    %v414 = vpop.f32.mrf.mxu0
    %v415 = vadd.f32 0.0, %v414
    %v416 = vpop.f32.mrf.mxu0
    %v417 = vpop.f32.mrf.mxu0
    %v418 = vadd.f32 0.0, %v417
    %v419 = vpop.f32.mrf.mxu0
    %420 = vmatprep.mubr.bf16.mxu0 0
    %421 = vmatmul.mubr.bf16.gmra.mxu0 %v330
    %v422 = vpop.f32.mrf.mxu0
    %v423 = vadd.f32 0.0, %v422
    %v424 = vpop.f32.mrf.mxu0
    %v425 = vpop.f32.mrf.mxu0
    %v426 = vadd.f32 0.0, %v425
    %v427 = vpop.f32.mrf.mxu0
    %428 = vmatprep.mubr.bf16.mxu0 0
    %429 = vmatmul.mubr.bf16.gmra.mxu0 %v331
    %v430 = vpop.f32.mrf.mxu0
    %v431 = vadd.f32 0.0, %v430
    %v432 = vpop.f32.mrf.mxu0
    %v433 = vpop.f32.mrf.mxu0
    %v434 = vadd.f32 0.0, %v433
    %v435 = vpop.f32.mrf.mxu0
    %436 = vdwg.mxu0
    %v437 = vmax.f32 %v375, 0.0
    %v438 = vmax.f32 %v378, 0.0
    %v439 = vmax.f32 %v383, 0.0
    %v440 = vmax.f32 %v386, 0.0
    %v441 = vmax.f32 %v391, 0.0
    %v442 = vmax.f32 %v394, 0.0
    %v443 = vmax.f32 %v399, 0.0
    %v444 = vmax.f32 %v402, 0.0
    %v445 = vmax.f32 %v407, 0.0
    %v446 = vmax.f32 %v410, 0.0
    %v447 = vmax.f32 %v415, 0.0
    %v448 = vmax.f32 %v418, 0.0
    %v449 = vmax.f32 %v423, 0.0
    %v450 = vmax.f32 %v426, 0.0
    %v451 = vmax.f32 %v431, 0.0
    %v452 = vmax.f32 %v434, 0.0
    %v453 = vpack.c.bf16 %v438, %v437
    %v454 = vpack.c.bf16 %v440, %v439
    %v455 = vpack.c.bf16 %v442, %v441
    %v456 = vpack.c.bf16 %v444, %v443
    %v457 = vpack.c.bf16 %v446, %v445
    %v458 = vpack.c.bf16 %v448, %v447
    %v459 = vpack.c.bf16 %v450, %v449
    %v460 = vpack.c.bf16 %v452, %v451
    %s461 = scalar_lea.vmem [#allocation2], 128
    %v462 = vld [vmem:[%s461] sm:$0xf]
    %v463 = vld [vmem:[%s461 + $0x4] sm:$0xf]
    %v464 = vld [vmem:[%s461 + $0x8] sm:$0xf]
    %v465 = vld [vmem:[%s461 + $0xc] sm:$0xf]
    %v466 = vld [vmem:[%s461 + $0x10] sm:$0xf]
    %v467 = vld [vmem:[%s461 + $0x14] sm:$0xf]
    %v468 = vld [vmem:[%s461 + $0x18] sm:$0xf]
    %v469 = vld [vmem:[%s461 + $0x1c] sm:$0xf]
    %v470 = vld [vmem:[%s461 + $0x20] sm:$0xf]
    %v471 = vld [vmem:[%s461 + $0x24] sm:$0xf]
    %v472 = vld [vmem:[%s461 + $0x28] sm:$0xf]
    %v473 = vld [vmem:[%s461 + $0x2c] sm:$0xf]
    %v474 = vld [vmem:[%s461 + $0x30] sm:$0xf]
    %v475 = vld [vmem:[%s461 + $0x34] sm:$0xf]
    %v476 = vld [vmem:[%s461 + $0x38] sm:$0xf]
    %v477 = vld [vmem:[%s461 + $0x3c] sm:$0xf]
    %v494 = vunpack.c.l.b16 %v462
    %v495 = vunpack.c.l.b16 %v463
    %v496 = vunpack.c.l.b16 %v464
    %v497 = vunpack.c.l.b16 %v465
    %v498 = vunpack.c.l.b16 %v466
    %v499 = vunpack.c.l.b16 %v467
    %v500 = vunpack.c.l.b16 %v468
    %v501 = vunpack.c.l.b16 %v469
    %v502 = vunpack.c.l.b16 %v470
    %v503 = vunpack.c.l.b16 %v471
    %v504 = vunpack.c.l.b16 %v472
    %v505 = vunpack.c.l.b16 %v473
    %v506 = vunpack.c.l.b16 %v474
    %v507 = vunpack.c.l.b16 %v475
    %v508 = vunpack.c.l.b16 %v476
    %v509 = vunpack.c.l.b16 %v477
    %v510 = vpack.c.b16 %v495, %v494
    %v511 = vpack.c.b16 %v497, %v496
    %v512 = vpack.c.b16 %v499, %v498
    %v513 = vpack.c.b16 %v501, %v500
    %v514 = vpack.c.b16 %v503, %v502
    %v515 = vpack.c.b16 %v505, %v504
    %v516 = vpack.c.b16 %v507, %v506
    %v517 = vpack.c.b16 %v509, %v508
    %526 = vmatprep.subr.bf16.mxu0 0
    %527 = vmatpush1.bf16.msra.mxu0 %v460
    %528 = vmatprep.subr.bf16.mxu0 0
    %529 = vmatpush1.bf16.msra.mxu0 %v459
    %530 = vmatprep.subr.bf16.mxu0 0
    %531 = vmatpush1.bf16.msra.mxu0 %v458
    %532 = vmatprep.subr.bf16.mxu0 0
    %533 = vmatpush1.bf16.msra.mxu0 %v457
    %534 = vmatprep.subr.bf16.mxu0 0
    %535 = vmatpush1.bf16.msra.mxu0 %v456
    %536 = vmatprep.subr.bf16.mxu0 0
    %537 = vmatpush1.bf16.msra.mxu0 %v455
    %538 = vmatprep.subr.bf16.mxu0 0
    %539 = vmatpush1.bf16.msra.mxu0 %v454
    %540 = vmatprep.subr.bf16.mxu0 0
    %541 = vmatpush1.bf16.msra.mxu0 %v453
    %542 = vmatprep.subr.bf16.mxu0 0
    %543 = vmatpush2.bf16.msra.mxu0 0
    %544 = vmatprep.subr.bf16.mxu0 0
    %545 = vmatpush2.bf16.msra.mxu0 0
    %546 = vmatprep.subr.bf16.mxu0 0
    %547 = vmatpush2.bf16.msra.mxu0 0
    %548 = vmatprep.subr.bf16.mxu0 0
    %549 = vmatpush2.bf16.msra.mxu0 0
    %550 = vmatprep.subr.bf16.mxu0 0
    %551 = vmatpush2.bf16.msra.mxu0 0
    %552 = vmatprep.subr.bf16.mxu0 0
    %553 = vmatpush2.bf16.msra.mxu0 0
    %554 = vmatprep.subr.bf16.mxu0 0
    %555 = vmatpush2.bf16.msra.mxu0 0
    %556 = vmatprep.subr.bf16.mxu0 0
    %557 = vmatpush2.bf16.msra.mxu0 0
    %558 = vmatprep.mubr.bf16.mxu0 0
    %559 = vmatmul.mubr.bf16.gmra.mxu0 %v510
    %v560 = vpop.f32.mrf.mxu0
    %v561 = vadd.f32 0.0, %v560
    %v562 = vpop.f32.mrf.mxu0
    %v563 = vpop.f32.mrf.mxu0
    %v564 = vadd.f32 0.0, %v563
    %v565 = vpop.f32.mrf.mxu0
    %566 = vmatprep.mubr.bf16.mxu0 0
    %567 = vmatmul.mubr.bf16.gmra.mxu0 %v511
    %v568 = vpop.f32.mrf.mxu0
    %v569 = vadd.f32 0.0, %v568
    %v570 = vpop.f32.mrf.mxu0
    %v571 = vpop.f32.mrf.mxu0
    %v572 = vadd.f32 0.0, %v571
    %v573 = vpop.f32.mrf.mxu0
    %574 = vmatprep.mubr.bf16.mxu0 0
    %575 = vmatmul.mubr.bf16.gmra.mxu0 %v512
    %v576 = vpop.f32.mrf.mxu0
    %v577 = vadd.f32 0.0, %v576
    %v578 = vpop.f32.mrf.mxu0
    %v579 = vpop.f32.mrf.mxu0
    %v580 = vadd.f32 0.0, %v579
    %v581 = vpop.f32.mrf.mxu0
    %582 = vmatprep.mubr.bf16.mxu0 0
    %583 = vmatmul.mubr.bf16.gmra.mxu0 %v513
    %v584 = vpop.f32.mrf.mxu0
    %v585 = vadd.f32 0.0, %v584
    %v586 = vpop.f32.mrf.mxu0
    %v587 = vpop.f32.mrf.mxu0
    %v588 = vadd.f32 0.0, %v587
    %v589 = vpop.f32.mrf.mxu0
    %590 = vmatprep.mubr.bf16.mxu0 0
    %591 = vmatmul.mubr.bf16.gmra.mxu0 %v514
    %v592 = vpop.f32.mrf.mxu0
    %v593 = vadd.f32 0.0, %v592
    %v594 = vpop.f32.mrf.mxu0
    %v595 = vpop.f32.mrf.mxu0
    %v596 = vadd.f32 0.0, %v595
    %v597 = vpop.f32.mrf.mxu0
    %598 = vmatprep.mubr.bf16.mxu0 0
    %599 = vmatmul.mubr.bf16.gmra.mxu0 %v515
    %v600 = vpop.f32.mrf.mxu0
    %v601 = vadd.f32 0.0, %v600
    %v602 = vpop.f32.mrf.mxu0
    %v603 = vpop.f32.mrf.mxu0
    %v604 = vadd.f32 0.0, %v603
    %v605 = vpop.f32.mrf.mxu0
    %606 = vmatprep.mubr.bf16.mxu0 0
    %607 = vmatmul.mubr.bf16.gmra.mxu0 %v516
    %v608 = vpop.f32.mrf.mxu0
    %v609 = vadd.f32 0.0, %v608
    %v610 = vpop.f32.mrf.mxu0
    %v611 = vpop.f32.mrf.mxu0
    %v612 = vadd.f32 0.0, %v611
    %v613 = vpop.f32.mrf.mxu0
    %614 = vmatprep.mubr.bf16.mxu0 0
    %615 = vmatmul.mubr.bf16.gmra.mxu0 %v517
    %v616 = vpop.f32.mrf.mxu0
    %v617 = vadd.f32 0.0, %v616
    %v618 = vpop.f32.mrf.mxu0
    %v619 = vpop.f32.mrf.mxu0
    %v620 = vadd.f32 0.0, %v619
    %v621 = vpop.f32.mrf.mxu0
    %622 = vdwg.mxu0
    %v623 = vmax.f32 %v561, 0.0
    %v624 = vmax.f32 %v564, 0.0
    %v625 = vmax.f32 %v569, 0.0
    %v626 = vmax.f32 %v572, 0.0
    %v627 = vmax.f32 %v577, 0.0
    %v628 = vmax.f32 %v580, 0.0
    %v629 = vmax.f32 %v585, 0.0
    %v630 = vmax.f32 %v588, 0.0
    %v631 = vmax.f32 %v593, 0.0
    %v632 = vmax.f32 %v596, 0.0
    %v633 = vmax.f32 %v601, 0.0
    %v634 = vmax.f32 %v604, 0.0
    %v635 = vmax.f32 %v609, 0.0
    %v636 = vmax.f32 %v612, 0.0
    %v637 = vmax.f32 %v617, 0.0
    %v638 = vmax.f32 %v620, 0.0
    %v639 = vpack.c.bf16 %v624, %v623
    %v640 = vpack.c.bf16 %v626, %v625
    %v641 = vpack.c.bf16 %v628, %v627
    %v642 = vpack.c.bf16 %v630, %v629
    %v643 = vpack.c.bf16 %v632, %v631
    %v644 = vpack.c.bf16 %v634, %v633
    %v645 = vpack.c.bf16 %v636, %v635
    %v646 = vpack.c.bf16 %v638, %v637
    %s647 = scalar_lea.vmem [#allocation2], 192
    %v648 = vld [vmem:[%s647] sm:$0xf]
    %v649 = vld [vmem:[%s647 + $0x4] sm:$0xf]
    %v650 = vld [vmem:[%s647 + $0x8] sm:$0xf]
    %v651 = vld [vmem:[%s647 + $0xc] sm:$0xf]
    %v652 = vld [vmem:[%s647 + $0x10] sm:$0xf]
    %v653 = vld [vmem:[%s647 + $0x14] sm:$0xf]
    %v654 = vld [vmem:[%s647 + $0x18] sm:$0xf]
    %v655 = vld [vmem:[%s647 + $0x1c] sm:$0xf]
    %v656 = vld [vmem:[%s647 + $0x20] sm:$0xf]
    %v657 = vld [vmem:[%s647 + $0x24] sm:$0xf]
    %v658 = vld [vmem:[%s647 + $0x28] sm:$0xf]
    %v659 = vld [vmem:[%s647 + $0x2c] sm:$0xf]
    %v660 = vld [vmem:[%s647 + $0x30] sm:$0xf]
    %v661 = vld [vmem:[%s647 + $0x34] sm:$0xf]
    %v662 = vld [vmem:[%s647 + $0x38] sm:$0xf]
    %v663 = vld [vmem:[%s647 + $0x3c] sm:$0xf]
    %v680 = vunpack.c.l.b16 %v648
    %v681 = vunpack.c.l.b16 %v649
    %v682 = vunpack.c.l.b16 %v650
    %v683 = vunpack.c.l.b16 %v651
    %v684 = vunpack.c.l.b16 %v652
    %v685 = vunpack.c.l.b16 %v653
    %v686 = vunpack.c.l.b16 %v654
    %v687 = vunpack.c.l.b16 %v655
    %v688 = vunpack.c.l.b16 %v656
    %v689 = vunpack.c.l.b16 %v657
    %v690 = vunpack.c.l.b16 %v658
    %v691 = vunpack.c.l.b16 %v659
    %v692 = vunpack.c.l.b16 %v660
    %v693 = vunpack.c.l.b16 %v661
    %v694 = vunpack.c.l.b16 %v662
    %v695 = vunpack.c.l.b16 %v663
    %v696 = vpack.c.b16 %v681, %v680
    %v697 = vpack.c.b16 %v683, %v682
    %v698 = vpack.c.b16 %v685, %v684
    %v699 = vpack.c.b16 %v687, %v686
    %v700 = vpack.c.b16 %v689, %v688
    %v701 = vpack.c.b16 %v691, %v690
    %v702 = vpack.c.b16 %v693, %v692
    %v703 = vpack.c.b16 %v695, %v694
    %712 = vmatprep.subr.bf16.mxu0 0
    %713 = vmatpush1.bf16.msra.mxu0 %v646
    %714 = vmatprep.subr.bf16.mxu0 0
    %715 = vmatpush1.bf16.msra.mxu0 %v645
    %716 = vmatprep.subr.bf16.mxu0 0
    %717 = vmatpush1.bf16.msra.mxu0 %v644
    %718 = vmatprep.subr.bf16.mxu0 0
    %719 = vmatpush1.bf16.msra.mxu0 %v643
    %720 = vmatprep.subr.bf16.mxu0 0
    %721 = vmatpush1.bf16.msra.mxu0 %v642
    %722 = vmatprep.subr.bf16.mxu0 0
    %723 = vmatpush1.bf16.msra.mxu0 %v641
    %724 = vmatprep.subr.bf16.mxu0 0
    %725 = vmatpush1.bf16.msra.mxu0 %v640
    %726 = vmatprep.subr.bf16.mxu0 0
    %727 = vmatpush1.bf16.msra.mxu0 %v639
    %728 = vmatprep.subr.bf16.mxu0 0
    %729 = vmatpush2.bf16.msra.mxu0 0
    %730 = vmatprep.subr.bf16.mxu0 0
    %731 = vmatpush2.bf16.msra.mxu0 0
    %732 = vmatprep.subr.bf16.mxu0 0
    %733 = vmatpush2.bf16.msra.mxu0 0
    %734 = vmatprep.subr.bf16.mxu0 0
    %735 = vmatpush2.bf16.msra.mxu0 0
    %736 = vmatprep.subr.bf16.mxu0 0
    %737 = vmatpush2.bf16.msra.mxu0 0
    %738 = vmatprep.subr.bf16.mxu0 0
    %739 = vmatpush2.bf16.msra.mxu0 0
    %740 = vmatprep.subr.bf16.mxu0 0
    %741 = vmatpush2.bf16.msra.mxu0 0
    %742 = vmatprep.subr.bf16.mxu0 0
    %743 = vmatpush2.bf16.msra.mxu0 0
    %744 = vmatprep.mubr.bf16.mxu0 0
    %745 = vmatmul.mubr.bf16.gmra.mxu0 %v696
    %v746 = vpop.f32.mrf.mxu0
    %v747 = vadd.f32 0.0, %v746
    %v748 = vpop.f32.mrf.mxu0
    %v749 = vpop.f32.mrf.mxu0
    %v750 = vadd.f32 0.0, %v749
    %v751 = vpop.f32.mrf.mxu0
    %752 = vmatprep.mubr.bf16.mxu0 0
    %753 = vmatmul.mubr.bf16.gmra.mxu0 %v697
    %v754 = vpop.f32.mrf.mxu0
    %v755 = vadd.f32 0.0, %v754
    %v756 = vpop.f32.mrf.mxu0
    %v757 = vpop.f32.mrf.mxu0
    %v758 = vadd.f32 0.0, %v757
    %v759 = vpop.f32.mrf.mxu0
    %760 = vmatprep.mubr.bf16.mxu0 0
    %761 = vmatmul.mubr.bf16.gmra.mxu0 %v698
    %v762 = vpop.f32.mrf.mxu0
    %v763 = vadd.f32 0.0, %v762
    %v764 = vpop.f32.mrf.mxu0
    %v765 = vpop.f32.mrf.mxu0
    %v766 = vadd.f32 0.0, %v765
    %v767 = vpop.f32.mrf.mxu0
    %768 = vmatprep.mubr.bf16.mxu0 0
    %769 = vmatmul.mubr.bf16.gmra.mxu0 %v699
    %v770 = vpop.f32.mrf.mxu0
    %v771 = vadd.f32 0.0, %v770
    %v772 = vpop.f32.mrf.mxu0
    %v773 = vpop.f32.mrf.mxu0
    %v774 = vadd.f32 0.0, %v773
    %v775 = vpop.f32.mrf.mxu0
    %776 = vmatprep.mubr.bf16.mxu0 0
    %777 = vmatmul.mubr.bf16.gmra.mxu0 %v700
    %v778 = vpop.f32.mrf.mxu0
    %v779 = vadd.f32 0.0, %v778
    %v780 = vpop.f32.mrf.mxu0
    %v781 = vpop.f32.mrf.mxu0
    %v782 = vadd.f32 0.0, %v781
    %v783 = vpop.f32.mrf.mxu0
    %784 = vmatprep.mubr.bf16.mxu0 0
    %785 = vmatmul.mubr.bf16.gmra.mxu0 %v701
    %v786 = vpop.f32.mrf.mxu0
    %v787 = vadd.f32 0.0, %v786
    %v788 = vpop.f32.mrf.mxu0
    %v789 = vpop.f32.mrf.mxu0
    %v790 = vadd.f32 0.0, %v789
    %v791 = vpop.f32.mrf.mxu0
    %792 = vmatprep.mubr.bf16.mxu0 0
    %793 = vmatmul.mubr.bf16.gmra.mxu0 %v702
    %v794 = vpop.f32.mrf.mxu0
    %v795 = vadd.f32 0.0, %v794
    %v796 = vpop.f32.mrf.mxu0
    %v797 = vpop.f32.mrf.mxu0
    %v798 = vadd.f32 0.0, %v797
    %v799 = vpop.f32.mrf.mxu0
    %800 = vmatprep.mubr.bf16.mxu0 0
    %801 = vmatmul.mubr.bf16.gmra.mxu0 %v703
    %v802 = vpop.f32.mrf.mxu0
    %v803 = vadd.f32 0.0, %v802
    %v804 = vpop.f32.mrf.mxu0
    %v805 = vpop.f32.mrf.mxu0
    %v806 = vadd.f32 0.0, %v805
    %v807 = vpop.f32.mrf.mxu0
    %808 = vdwg.mxu0
    %v809 = vmax.f32 %v747, 0.0
    %v810 = vmax.f32 %v750, 0.0
    %v811 = vmax.f32 %v755, 0.0
    %v812 = vmax.f32 %v758, 0.0
    %v813 = vmax.f32 %v763, 0.0
    %v814 = vmax.f32 %v766, 0.0
    %v815 = vmax.f32 %v771, 0.0
    %v816 = vmax.f32 %v774, 0.0
    %v817 = vmax.f32 %v779, 0.0
    %v818 = vmax.f32 %v782, 0.0
    %v819 = vmax.f32 %v787, 0.0
    %v820 = vmax.f32 %v790, 0.0
    %v821 = vmax.f32 %v795, 0.0
    %v822 = vmax.f32 %v798, 0.0
    %v823 = vmax.f32 %v803, 0.0
    %v824 = vmax.f32 %v806, 0.0
    %v825 = vpack.c.bf16 %v810, %v809
    %v826 = vpack.c.bf16 %v812, %v811
    %v827 = vpack.c.bf16 %v814, %v813
    %v828 = vpack.c.bf16 %v816, %v815
    %v829 = vpack.c.bf16 %v818, %v817
    %v830 = vpack.c.bf16 %v820, %v819
    %v831 = vpack.c.bf16 %v822, %v821
    %v832 = vpack.c.bf16 %v824, %v823
    %s833 = scalar_lea.vmem [#allocation2], 256
    %v834 = vld [vmem:[%s833] sm:$0xf]
    %v835 = vld [vmem:[%s833 + $0x4] sm:$0xf]
    %v836 = vld [vmem:[%s833 + $0x8] sm:$0xf]
    %v837 = vld [vmem:[%s833 + $0xc] sm:$0xf]
    %v838 = vld [vmem:[%s833 + $0x10] sm:$0xf]
    %v839 = vld [vmem:[%s833 + $0x14] sm:$0xf]
    %v840 = vld [vmem:[%s833 + $0x18] sm:$0xf]
    %v841 = vld [vmem:[%s833 + $0x1c] sm:$0xf]
    %v842 = vld [vmem:[%s833 + $0x20] sm:$0xf]
    %v843 = vld [vmem:[%s833 + $0x24] sm:$0xf]
    %v844 = vld [vmem:[%s833 + $0x28] sm:$0xf]
    %v845 = vld [vmem:[%s833 + $0x2c] sm:$0xf]
    %v846 = vld [vmem:[%s833 + $0x30] sm:$0xf]
    %v847 = vld [vmem:[%s833 + $0x34] sm:$0xf]
    %v848 = vld [vmem:[%s833 + $0x38] sm:$0xf]
    %v849 = vld [vmem:[%s833 + $0x3c] sm:$0xf]
    %v866 = vunpack.c.l.b16 %v834
    %v867 = vunpack.c.l.b16 %v835
    %v868 = vunpack.c.l.b16 %v836
    %v869 = vunpack.c.l.b16 %v837
    %v870 = vunpack.c.l.b16 %v838
    %v871 = vunpack.c.l.b16 %v839
    %v872 = vunpack.c.l.b16 %v840
    %v873 = vunpack.c.l.b16 %v841
    %v874 = vunpack.c.l.b16 %v842
    %v875 = vunpack.c.l.b16 %v843
    %v876 = vunpack.c.l.b16 %v844
    %v877 = vunpack.c.l.b16 %v845
    %v878 = vunpack.c.l.b16 %v846
    %v879 = vunpack.c.l.b16 %v847
    %v880 = vunpack.c.l.b16 %v848
    %v881 = vunpack.c.l.b16 %v849
    %v882 = vpack.c.b16 %v867, %v866
    %v883 = vpack.c.b16 %v869, %v868
    %v884 = vpack.c.b16 %v871, %v870
    %v885 = vpack.c.b16 %v873, %v872
    %v886 = vpack.c.b16 %v875, %v874
    %v887 = vpack.c.b16 %v877, %v876
    %v888 = vpack.c.b16 %v879, %v878
    %v889 = vpack.c.b16 %v881, %v880
    %898 = vmatprep.subr.bf16.mxu0 0
    %899 = vmatpush1.bf16.msra.mxu0 %v832
    %900 = vmatprep.subr.bf16.mxu0 0
    %901 = vmatpush1.bf16.msra.mxu0 %v831
    %902 = vmatprep.subr.bf16.mxu0 0
    %903 = vmatpush1.bf16.msra.mxu0 %v830
    %904 = vmatprep.subr.bf16.mxu0 0
    %905 = vmatpush1.bf16.msra.mxu0 %v829
    %906 = vmatprep.subr.bf16.mxu0 0
    %907 = vmatpush1.bf16.msra.mxu0 %v828
    %908 = vmatprep.subr.bf16.mxu0 0
    %909 = vmatpush1.bf16.msra.mxu0 %v827
    %910 = vmatprep.subr.bf16.mxu0 0
    %911 = vmatpush1.bf16.msra.mxu0 %v826
    %912 = vmatprep.subr.bf16.mxu0 0
    %913 = vmatpush1.bf16.msra.mxu0 %v825
    %914 = vmatprep.subr.bf16.mxu0 0
    %915 = vmatpush2.bf16.msra.mxu0 0
    %916 = vmatprep.subr.bf16.mxu0 0
    %917 = vmatpush2.bf16.msra.mxu0 0
    %918 = vmatprep.subr.bf16.mxu0 0
    %919 = vmatpush2.bf16.msra.mxu0 0
    %920 = vmatprep.subr.bf16.mxu0 0
    %921 = vmatpush2.bf16.msra.mxu0 0
    %922 = vmatprep.subr.bf16.mxu0 0
    %923 = vmatpush2.bf16.msra.mxu0 0
    %924 = vmatprep.subr.bf16.mxu0 0
    %925 = vmatpush2.bf16.msra.mxu0 0
    %926 = vmatprep.subr.bf16.mxu0 0
    %927 = vmatpush2.bf16.msra.mxu0 0
    %928 = vmatprep.subr.bf16.mxu0 0
    %929 = vmatpush2.bf16.msra.mxu0 0
    %930 = vmatprep.mubr.bf16.mxu0 0
    %931 = vmatmul.mubr.bf16.gmra.mxu0 %v882
    %v932 = vpop.f32.mrf.mxu0
    %v933 = vadd.f32 0.0, %v932
    %v934 = vpop.f32.mrf.mxu0
    %v935 = vpop.f32.mrf.mxu0
    %v936 = vadd.f32 0.0, %v935
    %v937 = vpop.f32.mrf.mxu0
    %938 = vmatprep.mubr.bf16.mxu0 0
    %939 = vmatmul.mubr.bf16.gmra.mxu0 %v883
    %v940 = vpop.f32.mrf.mxu0
    %v941 = vadd.f32 0.0, %v940
    %v942 = vpop.f32.mrf.mxu0
    %v943 = vpop.f32.mrf.mxu0
    %v944 = vadd.f32 0.0, %v943
    %v945 = vpop.f32.mrf.mxu0
    %946 = vmatprep.mubr.bf16.mxu0 0
    %947 = vmatmul.mubr.bf16.gmra.mxu0 %v884
    %v948 = vpop.f32.mrf.mxu0
    %v949 = vadd.f32 0.0, %v948
    %v950 = vpop.f32.mrf.mxu0
    %v951 = vpop.f32.mrf.mxu0
    %v952 = vadd.f32 0.0, %v951
    %v953 = vpop.f32.mrf.mxu0
    %954 = vmatprep.mubr.bf16.mxu0 0
    %955 = vmatmul.mubr.bf16.gmra.mxu0 %v885
    %v956 = vpop.f32.mrf.mxu0
    %v957 = vadd.f32 0.0, %v956
    %v958 = vpop.f32.mrf.mxu0
    %v959 = vpop.f32.mrf.mxu0
    %v960 = vadd.f32 0.0, %v959
    %v961 = vpop.f32.mrf.mxu0
    %962 = vmatprep.mubr.bf16.mxu0 0
    %963 = vmatmul.mubr.bf16.gmra.mxu0 %v886
    %v964 = vpop.f32.mrf.mxu0
    %v965 = vadd.f32 0.0, %v964
    %v966 = vpop.f32.mrf.mxu0
    %v967 = vpop.f32.mrf.mxu0
    %v968 = vadd.f32 0.0, %v967
    %v969 = vpop.f32.mrf.mxu0
    %970 = vmatprep.mubr.bf16.mxu0 0
    %971 = vmatmul.mubr.bf16.gmra.mxu0 %v887
    %v972 = vpop.f32.mrf.mxu0
    %v973 = vadd.f32 0.0, %v972
    %v974 = vpop.f32.mrf.mxu0
    %v975 = vpop.f32.mrf.mxu0
    %v976 = vadd.f32 0.0, %v975
    %v977 = vpop.f32.mrf.mxu0
    %978 = vmatprep.mubr.bf16.mxu0 0
    %979 = vmatmul.mubr.bf16.gmra.mxu0 %v888
    %v980 = vpop.f32.mrf.mxu0
    %v981 = vadd.f32 0.0, %v980
    %v982 = vpop.f32.mrf.mxu0
    %v983 = vpop.f32.mrf.mxu0
    %v984 = vadd.f32 0.0, %v983
    %v985 = vpop.f32.mrf.mxu0
    %986 = vmatprep.mubr.bf16.mxu0 0
    %987 = vmatmul.mubr.bf16.gmra.mxu0 %v889
    %v988 = vpop.f32.mrf.mxu0
    %v989 = vadd.f32 0.0, %v988
    %v990 = vpop.f32.mrf.mxu0
    %v991 = vpop.f32.mrf.mxu0
    %v992 = vadd.f32 0.0, %v991
    %v993 = vpop.f32.mrf.mxu0
    %994 = vdwg.mxu0
    %v995 = vmax.f32 %v933, 0.0
    %v996 = vmax.f32 %v936, 0.0
    %v997 = vmax.f32 %v941, 0.0
    %v998 = vmax.f32 %v944, 0.0
    %v999 = vmax.f32 %v949, 0.0
    %v1000 = vmax.f32 %v952, 0.0
    %v1001 = vmax.f32 %v957, 0.0
    %v1002 = vmax.f32 %v960, 0.0
    %v1003 = vmax.f32 %v965, 0.0
    %v1004 = vmax.f32 %v968, 0.0
    %v1005 = vmax.f32 %v973, 0.0
    %v1006 = vmax.f32 %v976, 0.0
    %v1007 = vmax.f32 %v981, 0.0
    %v1008 = vmax.f32 %v984, 0.0
    %v1009 = vmax.f32 %v989, 0.0
    %v1010 = vmax.f32 %v992, 0.0
    %v1011 = vpack.c.bf16 %v996, %v995
    %v1012 = vpack.c.bf16 %v998, %v997
    %v1013 = vpack.c.bf16 %v1000, %v999
    %v1014 = vpack.c.bf16 %v1002, %v1001
    %v1015 = vpack.c.bf16 %v1004, %v1003
    %v1016 = vpack.c.bf16 %v1006, %v1005
    %v1017 = vpack.c.bf16 %v1008, %v1007
    %v1018 = vpack.c.bf16 %v1010, %v1009
    %s1019 = scalar_lea.vmem [#allocation2], 320
    %v1020 = vld [vmem:[%s1019] sm:$0xf]
    %v1021 = vld [vmem:[%s1019 + $0x4] sm:$0xf]
    %v1022 = vld [vmem:[%s1019 + $0x8] sm:$0xf]
    %v1023 = vld [vmem:[%s1019 + $0xc] sm:$0xf]
    %v1024 = vld [vmem:[%s1019 + $0x10] sm:$0xf]
    %v1025 = vld [vmem:[%s1019 + $0x14] sm:$0xf]
    %v1026 = vld [vmem:[%s1019 + $0x18] sm:$0xf]
    %v1027 = vld [vmem:[%s1019 + $0x1c] sm:$0xf]
    %v1028 = vld [vmem:[%s1019 + $0x20] sm:$0xf]
    %v1029 = vld [vmem:[%s1019 + $0x24] sm:$0xf]
    %v1030 = vld [vmem:[%s1019 + $0x28] sm:$0xf]
    %v1031 = vld [vmem:[%s1019 + $0x2c] sm:$0xf]
    %v1032 = vld [vmem:[%s1019 + $0x30] sm:$0xf]
    %v1033 = vld [vmem:[%s1019 + $0x34] sm:$0xf]
    %v1034 = vld [vmem:[%s1019 + $0x38] sm:$0xf]
    %v1035 = vld [vmem:[%s1019 + $0x3c] sm:$0xf]
    %v1052 = vunpack.c.l.b16 %v1020
    %v1053 = vunpack.c.l.b16 %v1021
    %v1054 = vunpack.c.l.b16 %v1022
    %v1055 = vunpack.c.l.b16 %v1023
    %v1056 = vunpack.c.l.b16 %v1024
    %v1057 = vunpack.c.l.b16 %v1025
    %v1058 = vunpack.c.l.b16 %v1026
    %v1059 = vunpack.c.l.b16 %v1027
    %v1060 = vunpack.c.l.b16 %v1028
    %v1061 = vunpack.c.l.b16 %v1029
    %v1062 = vunpack.c.l.b16 %v1030
    %v1063 = vunpack.c.l.b16 %v1031
    %v1064 = vunpack.c.l.b16 %v1032
    %v1065 = vunpack.c.l.b16 %v1033
    %v1066 = vunpack.c.l.b16 %v1034
    %v1067 = vunpack.c.l.b16 %v1035
    %v1068 = vpack.c.b16 %v1053, %v1052
    %v1069 = vpack.c.b16 %v1055, %v1054
    %v1070 = vpack.c.b16 %v1057, %v1056
    %v1071 = vpack.c.b16 %v1059, %v1058
    %v1072 = vpack.c.b16 %v1061, %v1060
    %v1073 = vpack.c.b16 %v1063, %v1062
    %v1074 = vpack.c.b16 %v1065, %v1064
    %v1075 = vpack.c.b16 %v1067, %v1066
    %1084 = vmatprep.subr.bf16.mxu0 0
    %1085 = vmatpush1.bf16.msra.mxu0 %v1018
    %1086 = vmatprep.subr.bf16.mxu0 0
    %1087 = vmatpush1.bf16.msra.mxu0 %v1017
    %1088 = vmatprep.subr.bf16.mxu0 0
    %1089 = vmatpush1.bf16.msra.mxu0 %v1016
    %1090 = vmatprep.subr.bf16.mxu0 0
    %1091 = vmatpush1.bf16.msra.mxu0 %v1015
    %1092 = vmatprep.subr.bf16.mxu0 0
    %1093 = vmatpush1.bf16.msra.mxu0 %v1014
    %1094 = vmatprep.subr.bf16.mxu0 0
    %1095 = vmatpush1.bf16.msra.mxu0 %v1013
    %1096 = vmatprep.subr.bf16.mxu0 0
    %1097 = vmatpush1.bf16.msra.mxu0 %v1012
    %1098 = vmatprep.subr.bf16.mxu0 0
    %1099 = vmatpush1.bf16.msra.mxu0 %v1011
    %1100 = vmatprep.subr.bf16.mxu0 0
    %1101 = vmatpush2.bf16.msra.mxu0 0
    %1102 = vmatprep.subr.bf16.mxu0 0
    %1103 = vmatpush2.bf16.msra.mxu0 0
    %1104 = vmatprep.subr.bf16.mxu0 0
    %1105 = vmatpush2.bf16.msra.mxu0 0
    %1106 = vmatprep.subr.bf16.mxu0 0
    %1107 = vmatpush2.bf16.msra.mxu0 0
    %1108 = vmatprep.subr.bf16.mxu0 0
    %1109 = vmatpush2.bf16.msra.mxu0 0
    %1110 = vmatprep.subr.bf16.mxu0 0
    %1111 = vmatpush2.bf16.msra.mxu0 0
    %1112 = vmatprep.subr.bf16.mxu0 0
    %1113 = vmatpush2.bf16.msra.mxu0 0
    %1114 = vmatprep.subr.bf16.mxu0 0
    %1115 = vmatpush2.bf16.msra.mxu0 0
    %1116 = vmatprep.mubr.bf16.mxu0 0
    %1117 = vmatmul.mubr.bf16.gmra.mxu0 %v1068
    %v1118 = vpop.f32.mrf.mxu0
    %v1119 = vadd.f32 0.0, %v1118
    %v1120 = vpop.f32.mrf.mxu0
    %v1121 = vpop.f32.mrf.mxu0
    %v1122 = vadd.f32 0.0, %v1121
    %v1123 = vpop.f32.mrf.mxu0
    %1124 = vmatprep.mubr.bf16.mxu0 0
    %1125 = vmatmul.mubr.bf16.gmra.mxu0 %v1069
    %v1126 = vpop.f32.mrf.mxu0
    %v1127 = vadd.f32 0.0, %v1126
    %v1128 = vpop.f32.mrf.mxu0
    %v1129 = vpop.f32.mrf.mxu0
    %v1130 = vadd.f32 0.0, %v1129
    %v1131 = vpop.f32.mrf.mxu0
    %1132 = vmatprep.mubr.bf16.mxu0 0
    %1133 = vmatmul.mubr.bf16.gmra.mxu0 %v1070
    %v1134 = vpop.f32.mrf.mxu0
    %v1135 = vadd.f32 0.0, %v1134
    %v1136 = vpop.f32.mrf.mxu0
    %v1137 = vpop.f32.mrf.mxu0
    %v1138 = vadd.f32 0.0, %v1137
    %v1139 = vpop.f32.mrf.mxu0
    %1140 = vmatprep.mubr.bf16.mxu0 0
    %1141 = vmatmul.mubr.bf16.gmra.mxu0 %v1071
    %v1142 = vpop.f32.mrf.mxu0
    %v1143 = vadd.f32 0.0, %v1142
    %v1144 = vpop.f32.mrf.mxu0
    %v1145 = vpop.f32.mrf.mxu0
    %v1146 = vadd.f32 0.0, %v1145
    %v1147 = vpop.f32.mrf.mxu0
    %1148 = vmatprep.mubr.bf16.mxu0 0
    %1149 = vmatmul.mubr.bf16.gmra.mxu0 %v1072
    %v1150 = vpop.f32.mrf.mxu0
    %v1151 = vadd.f32 0.0, %v1150
    %v1152 = vpop.f32.mrf.mxu0
    %v1153 = vpop.f32.mrf.mxu0
    %v1154 = vadd.f32 0.0, %v1153
    %v1155 = vpop.f32.mrf.mxu0
    %1156 = vmatprep.mubr.bf16.mxu0 0
    %1157 = vmatmul.mubr.bf16.gmra.mxu0 %v1073
    %v1158 = vpop.f32.mrf.mxu0
    %v1159 = vadd.f32 0.0, %v1158
    %v1160 = vpop.f32.mrf.mxu0
    %v1161 = vpop.f32.mrf.mxu0
    %v1162 = vadd.f32 0.0, %v1161
    %v1163 = vpop.f32.mrf.mxu0
    %1164 = vmatprep.mubr.bf16.mxu0 0
    %1165 = vmatmul.mubr.bf16.gmra.mxu0 %v1074
    %v1166 = vpop.f32.mrf.mxu0
    %v1167 = vadd.f32 0.0, %v1166
    %v1168 = vpop.f32.mrf.mxu0
    %v1169 = vpop.f32.mrf.mxu0
    %v1170 = vadd.f32 0.0, %v1169
    %v1171 = vpop.f32.mrf.mxu0
    %1172 = vmatprep.mubr.bf16.mxu0 0
    %1173 = vmatmul.mubr.bf16.gmra.mxu0 %v1075
    %v1174 = vpop.f32.mrf.mxu0
    %v1175 = vadd.f32 0.0, %v1174
    %v1176 = vpop.f32.mrf.mxu0
    %v1177 = vpop.f32.mrf.mxu0
    %v1178 = vadd.f32 0.0, %v1177
    %v1179 = vpop.f32.mrf.mxu0
    %1180 = vdwg.mxu0
    %v1181 = vmax.f32 %v1119, 0.0
    %v1182 = vmax.f32 %v1122, 0.0
    %v1183 = vmax.f32 %v1127, 0.0
    %v1184 = vmax.f32 %v1130, 0.0
    %v1185 = vmax.f32 %v1135, 0.0
    %v1186 = vmax.f32 %v1138, 0.0
    %v1187 = vmax.f32 %v1143, 0.0
    %v1188 = vmax.f32 %v1146, 0.0
    %v1189 = vmax.f32 %v1151, 0.0
    %v1190 = vmax.f32 %v1154, 0.0
    %v1191 = vmax.f32 %v1159, 0.0
    %v1192 = vmax.f32 %v1162, 0.0
    %v1193 = vmax.f32 %v1167, 0.0
    %v1194 = vmax.f32 %v1170, 0.0
    %v1195 = vmax.f32 %v1175, 0.0
    %v1196 = vmax.f32 %v1178, 0.0
    %v1197 = vpack.c.bf16 %v1182, %v1181
    %v1198 = vpack.c.bf16 %v1184, %v1183
    %v1199 = vpack.c.bf16 %v1186, %v1185
    %v1200 = vpack.c.bf16 %v1188, %v1187
    %v1201 = vpack.c.bf16 %v1190, %v1189
    %v1202 = vpack.c.bf16 %v1192, %v1191
    %v1203 = vpack.c.bf16 %v1194, %v1193
    %v1204 = vpack.c.bf16 %v1196, %v1195
    %s1205 = scalar_lea.vmem [#allocation2], 384
    %v1206 = vld [vmem:[%s1205] sm:$0xf]
    %v1207 = vld [vmem:[%s1205 + $0x4] sm:$0xf]
    %v1208 = vld [vmem:[%s1205 + $0x8] sm:$0xf]
    %v1209 = vld [vmem:[%s1205 + $0xc] sm:$0xf]
    %v1210 = vld [vmem:[%s1205 + $0x10] sm:$0xf]
    %v1211 = vld [vmem:[%s1205 + $0x14] sm:$0xf]
    %v1212 = vld [vmem:[%s1205 + $0x18] sm:$0xf]
    %v1213 = vld [vmem:[%s1205 + $0x1c] sm:$0xf]
    %v1214 = vld [vmem:[%s1205 + $0x20] sm:$0xf]
    %v1215 = vld [vmem:[%s1205 + $0x24] sm:$0xf]
    %v1216 = vld [vmem:[%s1205 + $0x28] sm:$0xf]
    %v1217 = vld [vmem:[%s1205 + $0x2c] sm:$0xf]
    %v1218 = vld [vmem:[%s1205 + $0x30] sm:$0xf]
    %v1219 = vld [vmem:[%s1205 + $0x34] sm:$0xf]
    %v1220 = vld [vmem:[%s1205 + $0x38] sm:$0xf]
    %v1221 = vld [vmem:[%s1205 + $0x3c] sm:$0xf]
    %v1238 = vunpack.c.l.b16 %v1206
    %v1239 = vunpack.c.l.b16 %v1207
    %v1240 = vunpack.c.l.b16 %v1208
    %v1241 = vunpack.c.l.b16 %v1209
    %v1242 = vunpack.c.l.b16 %v1210
    %v1243 = vunpack.c.l.b16 %v1211
    %v1244 = vunpack.c.l.b16 %v1212
    %v1245 = vunpack.c.l.b16 %v1213
    %v1246 = vunpack.c.l.b16 %v1214
    %v1247 = vunpack.c.l.b16 %v1215
    %v1248 = vunpack.c.l.b16 %v1216
    %v1249 = vunpack.c.l.b16 %v1217
    %v1250 = vunpack.c.l.b16 %v1218
    %v1251 = vunpack.c.l.b16 %v1219
    %v1252 = vunpack.c.l.b16 %v1220
    %v1253 = vunpack.c.l.b16 %v1221
    %v1254 = vpack.c.b16 %v1239, %v1238
    %v1255 = vpack.c.b16 %v1241, %v1240
    %v1256 = vpack.c.b16 %v1243, %v1242
    %v1257 = vpack.c.b16 %v1245, %v1244
    %v1258 = vpack.c.b16 %v1247, %v1246
    %v1259 = vpack.c.b16 %v1249, %v1248
    %v1260 = vpack.c.b16 %v1251, %v1250
    %v1261 = vpack.c.b16 %v1253, %v1252
    %1270 = vmatprep.subr.bf16.mxu0 0
    %1271 = vmatpush1.bf16.msra.mxu0 %v1204
    %1272 = vmatprep.subr.bf16.mxu0 0
    %1273 = vmatpush1.bf16.msra.mxu0 %v1203
    %1274 = vmatprep.subr.bf16.mxu0 0
    %1275 = vmatpush1.bf16.msra.mxu0 %v1202
    %1276 = vmatprep.subr.bf16.mxu0 0
    %1277 = vmatpush1.bf16.msra.mxu0 %v1201
    %1278 = vmatprep.subr.bf16.mxu0 0
    %1279 = vmatpush1.bf16.msra.mxu0 %v1200
    %1280 = vmatprep.subr.bf16.mxu0 0
    %1281 = vmatpush1.bf16.msra.mxu0 %v1199
    %1282 = vmatprep.subr.bf16.mxu0 0
    %1283 = vmatpush1.bf16.msra.mxu0 %v1198
    %1284 = vmatprep.subr.bf16.mxu0 0
    %1285 = vmatpush1.bf16.msra.mxu0 %v1197
    %1286 = vmatprep.subr.bf16.mxu0 0
    %1287 = vmatpush2.bf16.msra.mxu0 0
    %1288 = vmatprep.subr.bf16.mxu0 0
    %1289 = vmatpush2.bf16.msra.mxu0 0
    %1290 = vmatprep.subr.bf16.mxu0 0
    %1291 = vmatpush2.bf16.msra.mxu0 0
    %1292 = vmatprep.subr.bf16.mxu0 0
    %1293 = vmatpush2.bf16.msra.mxu0 0
    %1294 = vmatprep.subr.bf16.mxu0 0
    %1295 = vmatpush2.bf16.msra.mxu0 0
    %1296 = vmatprep.subr.bf16.mxu0 0
    %1297 = vmatpush2.bf16.msra.mxu0 0
    %1298 = vmatprep.subr.bf16.mxu0 0
    %1299 = vmatpush2.bf16.msra.mxu0 0
    %1300 = vmatprep.subr.bf16.mxu0 0
    %1301 = vmatpush2.bf16.msra.mxu0 0
    %1302 = vmatprep.mubr.bf16.mxu0 0
    %1303 = vmatmul.mubr.bf16.gmra.mxu0 %v1254
    %v1304 = vpop.f32.mrf.mxu0
    %v1305 = vadd.f32 0.0, %v1304
    %v1306 = vpop.f32.mrf.mxu0
    %v1307 = vpop.f32.mrf.mxu0
    %v1308 = vadd.f32 0.0, %v1307
    %v1309 = vpop.f32.mrf.mxu0
    %1310 = vmatprep.mubr.bf16.mxu0 0
    %1311 = vmatmul.mubr.bf16.gmra.mxu0 %v1255
    %v1312 = vpop.f32.mrf.mxu0
    %v1313 = vadd.f32 0.0, %v1312
    %v1314 = vpop.f32.mrf.mxu0
    %v1315 = vpop.f32.mrf.mxu0
    %v1316 = vadd.f32 0.0, %v1315
    %v1317 = vpop.f32.mrf.mxu0
    %1318 = vmatprep.mubr.bf16.mxu0 0
    %1319 = vmatmul.mubr.bf16.gmra.mxu0 %v1256
    %v1320 = vpop.f32.mrf.mxu0
    %v1321 = vadd.f32 0.0, %v1320
    %v1322 = vpop.f32.mrf.mxu0
    %v1323 = vpop.f32.mrf.mxu0
    %v1324 = vadd.f32 0.0, %v1323
    %v1325 = vpop.f32.mrf.mxu0
    %1326 = vmatprep.mubr.bf16.mxu0 0
    %1327 = vmatmul.mubr.bf16.gmra.mxu0 %v1257
    %v1328 = vpop.f32.mrf.mxu0
    %v1329 = vadd.f32 0.0, %v1328
    %v1330 = vpop.f32.mrf.mxu0
    %v1331 = vpop.f32.mrf.mxu0
    %v1332 = vadd.f32 0.0, %v1331
    %v1333 = vpop.f32.mrf.mxu0
    %1334 = vmatprep.mubr.bf16.mxu0 0
    %1335 = vmatmul.mubr.bf16.gmra.mxu0 %v1258
    %v1336 = vpop.f32.mrf.mxu0
    %v1337 = vadd.f32 0.0, %v1336
    %v1338 = vpop.f32.mrf.mxu0
    %v1339 = vpop.f32.mrf.mxu0
    %v1340 = vadd.f32 0.0, %v1339
    %v1341 = vpop.f32.mrf.mxu0
    %1342 = vmatprep.mubr.bf16.mxu0 0
    %1343 = vmatmul.mubr.bf16.gmra.mxu0 %v1259
    %v1344 = vpop.f32.mrf.mxu0
    %v1345 = vadd.f32 0.0, %v1344
    %v1346 = vpop.f32.mrf.mxu0
    %v1347 = vpop.f32.mrf.mxu0
    %v1348 = vadd.f32 0.0, %v1347
    %v1349 = vpop.f32.mrf.mxu0
    %1350 = vmatprep.mubr.bf16.mxu0 0
    %1351 = vmatmul.mubr.bf16.gmra.mxu0 %v1260
    %v1352 = vpop.f32.mrf.mxu0
    %v1353 = vadd.f32 0.0, %v1352
    %v1354 = vpop.f32.mrf.mxu0
    %v1355 = vpop.f32.mrf.mxu0
    %v1356 = vadd.f32 0.0, %v1355
    %v1357 = vpop.f32.mrf.mxu0
    %1358 = vmatprep.mubr.bf16.mxu0 0
    %1359 = vmatmul.mubr.bf16.gmra.mxu0 %v1261
    %v1360 = vpop.f32.mrf.mxu0
    %v1361 = vadd.f32 0.0, %v1360
    %v1362 = vpop.f32.mrf.mxu0
    %v1363 = vpop.f32.mrf.mxu0
    %v1364 = vadd.f32 0.0, %v1363
    %v1365 = vpop.f32.mrf.mxu0
    %1366 = vdwg.mxu0
    %v1367 = vmax.f32 %v1305, 0.0
    %v1368 = vmax.f32 %v1308, 0.0
    %v1369 = vmax.f32 %v1313, 0.0
    %v1370 = vmax.f32 %v1316, 0.0
    %v1371 = vmax.f32 %v1321, 0.0
    %v1372 = vmax.f32 %v1324, 0.0
    %v1373 = vmax.f32 %v1329, 0.0
    %v1374 = vmax.f32 %v1332, 0.0
    %v1375 = vmax.f32 %v1337, 0.0
    %v1376 = vmax.f32 %v1340, 0.0
    %v1377 = vmax.f32 %v1345, 0.0
    %v1378 = vmax.f32 %v1348, 0.0
    %v1379 = vmax.f32 %v1353, 0.0
    %v1380 = vmax.f32 %v1356, 0.0
    %v1381 = vmax.f32 %v1361, 0.0
    %v1382 = vmax.f32 %v1364, 0.0
    %v1383 = vpack.c.bf16 %v1368, %v1367
    %v1384 = vpack.c.bf16 %v1370, %v1369
    %v1385 = vpack.c.bf16 %v1372, %v1371
    %v1386 = vpack.c.bf16 %v1374, %v1373
    %v1387 = vpack.c.bf16 %v1376, %v1375
    %v1388 = vpack.c.bf16 %v1378, %v1377
    %v1389 = vpack.c.bf16 %v1380, %v1379
    %v1390 = vpack.c.bf16 %v1382, %v1381
    %s1391 = scalar_lea.vmem [#allocation2], 448
    %v1392 = vld [vmem:[%s1391] sm:$0xf]
    %v1393 = vld [vmem:[%s1391 + $0x4] sm:$0xf]
    %v1394 = vld [vmem:[%s1391 + $0x8] sm:$0xf]
    %v1395 = vld [vmem:[%s1391 + $0xc] sm:$0xf]
    %v1396 = vld [vmem:[%s1391 + $0x10] sm:$0xf]
    %v1397 = vld [vmem:[%s1391 + $0x14] sm:$0xf]
    %v1398 = vld [vmem:[%s1391 + $0x18] sm:$0xf]
    %v1399 = vld [vmem:[%s1391 + $0x1c] sm:$0xf]
    %v1400 = vld [vmem:[%s1391 + $0x20] sm:$0xf]
    %v1401 = vld [vmem:[%s1391 + $0x24] sm:$0xf]
    %v1402 = vld [vmem:[%s1391 + $0x28] sm:$0xf]
    %v1403 = vld [vmem:[%s1391 + $0x2c] sm:$0xf]
    %v1404 = vld [vmem:[%s1391 + $0x30] sm:$0xf]
    %v1405 = vld [vmem:[%s1391 + $0x34] sm:$0xf]
    %v1406 = vld [vmem:[%s1391 + $0x38] sm:$0xf]
    %v1407 = vld [vmem:[%s1391 + $0x3c] sm:$0xf]
    %v1424 = vunpack.c.l.b16 %v1392
    %v1425 = vunpack.c.l.b16 %v1393
    %v1426 = vunpack.c.l.b16 %v1394
    %v1427 = vunpack.c.l.b16 %v1395
    %v1428 = vunpack.c.l.b16 %v1396
    %v1429 = vunpack.c.l.b16 %v1397
    %v1430 = vunpack.c.l.b16 %v1398
    %v1431 = vunpack.c.l.b16 %v1399
    %v1432 = vunpack.c.l.b16 %v1400
    %v1433 = vunpack.c.l.b16 %v1401
    %v1434 = vunpack.c.l.b16 %v1402
    %v1435 = vunpack.c.l.b16 %v1403
    %v1436 = vunpack.c.l.b16 %v1404
    %v1437 = vunpack.c.l.b16 %v1405
    %v1438 = vunpack.c.l.b16 %v1406
    %v1439 = vunpack.c.l.b16 %v1407
    %v1440 = vpack.c.b16 %v1425, %v1424
    %v1441 = vpack.c.b16 %v1427, %v1426
    %v1442 = vpack.c.b16 %v1429, %v1428
    %v1443 = vpack.c.b16 %v1431, %v1430
    %v1444 = vpack.c.b16 %v1433, %v1432
    %v1445 = vpack.c.b16 %v1435, %v1434
    %v1446 = vpack.c.b16 %v1437, %v1436
    %v1447 = vpack.c.b16 %v1439, %v1438
    %1456 = vmatprep.subr.bf16.mxu0 0
    %1457 = vmatpush1.bf16.msra.mxu0 %v1390
    %1458 = vmatprep.subr.bf16.mxu0 0
    %1459 = vmatpush1.bf16.msra.mxu0 %v1389
    %1460 = vmatprep.subr.bf16.mxu0 0
    %1461 = vmatpush1.bf16.msra.mxu0 %v1388
    %1462 = vmatprep.subr.bf16.mxu0 0
    %1463 = vmatpush1.bf16.msra.mxu0 %v1387
    %1464 = vmatprep.subr.bf16.mxu0 0
    %1465 = vmatpush1.bf16.msra.mxu0 %v1386
    %1466 = vmatprep.subr.bf16.mxu0 0
    %1467 = vmatpush1.bf16.msra.mxu0 %v1385
    %1468 = vmatprep.subr.bf16.mxu0 0
    %1469 = vmatpush1.bf16.msra.mxu0 %v1384
    %1470 = vmatprep.subr.bf16.mxu0 0
    %1471 = vmatpush1.bf16.msra.mxu0 %v1383
    %1472 = vmatprep.subr.bf16.mxu0 0
    %1473 = vmatpush2.bf16.msra.mxu0 0
    %1474 = vmatprep.subr.bf16.mxu0 0
    %1475 = vmatpush2.bf16.msra.mxu0 0
    %1476 = vmatprep.subr.bf16.mxu0 0
    %1477 = vmatpush2.bf16.msra.mxu0 0
    %1478 = vmatprep.subr.bf16.mxu0 0
    %1479 = vmatpush2.bf16.msra.mxu0 0
    %1480 = vmatprep.subr.bf16.mxu0 0
    %1481 = vmatpush2.bf16.msra.mxu0 0
    %1482 = vmatprep.subr.bf16.mxu0 0
    %1483 = vmatpush2.bf16.msra.mxu0 0
    %1484 = vmatprep.subr.bf16.mxu0 0
    %1485 = vmatpush2.bf16.msra.mxu0 0
    %1486 = vmatprep.subr.bf16.mxu0 0
    %1487 = vmatpush2.bf16.msra.mxu0 0
    %1488 = vmatprep.mubr.bf16.mxu0 0
    %1489 = vmatmul.mubr.bf16.gmra.mxu0 %v1440
    %v1490 = vpop.f32.mrf.mxu0
    %v1491 = vadd.f32 0.0, %v1490
    %v1492 = vpop.f32.mrf.mxu0
    %v1493 = vpop.f32.mrf.mxu0
    %v1494 = vadd.f32 0.0, %v1493
    %v1495 = vpop.f32.mrf.mxu0
    %1496 = vmatprep.mubr.bf16.mxu0 0
    %1497 = vmatmul.mubr.bf16.gmra.mxu0 %v1441
    %v1498 = vpop.f32.mrf.mxu0
    %v1499 = vadd.f32 0.0, %v1498
    %v1500 = vpop.f32.mrf.mxu0
    %v1501 = vpop.f32.mrf.mxu0
    %v1502 = vadd.f32 0.0, %v1501
    %v1503 = vpop.f32.mrf.mxu0
    %1504 = vmatprep.mubr.bf16.mxu0 0
    %1505 = vmatmul.mubr.bf16.gmra.mxu0 %v1442
    %v1506 = vpop.f32.mrf.mxu0
    %v1507 = vadd.f32 0.0, %v1506
    %v1508 = vpop.f32.mrf.mxu0
    %v1509 = vpop.f32.mrf.mxu0
    %v1510 = vadd.f32 0.0, %v1509
    %v1511 = vpop.f32.mrf.mxu0
    %1512 = vmatprep.mubr.bf16.mxu0 0
    %1513 = vmatmul.mubr.bf16.gmra.mxu0 %v1443
    %v1514 = vpop.f32.mrf.mxu0
    %v1515 = vadd.f32 0.0, %v1514
    %v1516 = vpop.f32.mrf.mxu0
    %v1517 = vpop.f32.mrf.mxu0
    %v1518 = vadd.f32 0.0, %v1517
    %v1519 = vpop.f32.mrf.mxu0
    %1520 = vmatprep.mubr.bf16.mxu0 0
    %1521 = vmatmul.mubr.bf16.gmra.mxu0 %v1444
    %v1522 = vpop.f32.mrf.mxu0
    %v1523 = vadd.f32 0.0, %v1522
    %v1524 = vpop.f32.mrf.mxu0
    %v1525 = vpop.f32.mrf.mxu0
    %v1526 = vadd.f32 0.0, %v1525
    %v1527 = vpop.f32.mrf.mxu0
    %1528 = vmatprep.mubr.bf16.mxu0 0
    %1529 = vmatmul.mubr.bf16.gmra.mxu0 %v1445
    %v1530 = vpop.f32.mrf.mxu0
    %v1531 = vadd.f32 0.0, %v1530
    %v1532 = vpop.f32.mrf.mxu0
    %v1533 = vpop.f32.mrf.mxu0
    %v1534 = vadd.f32 0.0, %v1533
    %v1535 = vpop.f32.mrf.mxu0
    %1536 = vmatprep.mubr.bf16.mxu0 0
    %1537 = vmatmul.mubr.bf16.gmra.mxu0 %v1446
    %v1538 = vpop.f32.mrf.mxu0
    %v1539 = vadd.f32 0.0, %v1538
    %v1540 = vpop.f32.mrf.mxu0
    %v1541 = vpop.f32.mrf.mxu0
    %v1542 = vadd.f32 0.0, %v1541
    %v1543 = vpop.f32.mrf.mxu0
    %1544 = vmatprep.mubr.bf16.mxu0 0
    %1545 = vmatmul.mubr.bf16.gmra.mxu0 %v1447
    %v1546 = vpop.f32.mrf.mxu0
    %v1547 = vadd.f32 0.0, %v1546
    %v1548 = vpop.f32.mrf.mxu0
    %v1549 = vpop.f32.mrf.mxu0
    %v1550 = vadd.f32 0.0, %v1549
    %v1551 = vpop.f32.mrf.mxu0
    %1552 = vdwg.mxu0
    %v1553 = vmax.f32 %v1491, 0.0
    %v1554 = vmax.f32 %v1494, 0.0
    %v1555 = vmax.f32 %v1499, 0.0
    %v1556 = vmax.f32 %v1502, 0.0
    %v1557 = vmax.f32 %v1507, 0.0
    %v1558 = vmax.f32 %v1510, 0.0
    %v1559 = vmax.f32 %v1515, 0.0
    %v1560 = vmax.f32 %v1518, 0.0
    %v1561 = vmax.f32 %v1523, 0.0
    %v1562 = vmax.f32 %v1526, 0.0
    %v1563 = vmax.f32 %v1531, 0.0
    %v1564 = vmax.f32 %v1534, 0.0
    %v1565 = vmax.f32 %v1539, 0.0
    %v1566 = vmax.f32 %v1542, 0.0
    %v1567 = vmax.f32 %v1547, 0.0
    %v1568 = vmax.f32 %v1550, 0.0
    %v1569 = vpack.c.bf16 %v1554, %v1553
    %v1570 = vpack.c.bf16 %v1556, %v1555
    %v1571 = vpack.c.bf16 %v1558, %v1557
    %v1572 = vpack.c.bf16 %v1560, %v1559
    %v1573 = vpack.c.bf16 %v1562, %v1561
    %v1574 = vpack.c.bf16 %v1564, %v1563
    %v1575 = vpack.c.bf16 %v1566, %v1565
    %v1576 = vpack.c.bf16 %v1568, %v1567
    %s1577 = scalar_lea.vmem [#allocation2], 512
    %v1578 = vld [vmem:[%s1577] sm:$0xf]
    %v1579 = vld [vmem:[%s1577 + $0x4] sm:$0xf]
    %v1580 = vld [vmem:[%s1577 + $0x8] sm:$0xf]
    %v1581 = vld [vmem:[%s1577 + $0xc] sm:$0xf]
    %v1582 = vld [vmem:[%s1577 + $0x10] sm:$0xf]
    %v1583 = vld [vmem:[%s1577 + $0x14] sm:$0xf]
    %v1584 = vld [vmem:[%s1577 + $0x18] sm:$0xf]
    %v1585 = vld [vmem:[%s1577 + $0x1c] sm:$0xf]
    %v1586 = vld [vmem:[%s1577 + $0x20] sm:$0xf]
    %v1587 = vld [vmem:[%s1577 + $0x24] sm:$0xf]
    %v1588 = vld [vmem:[%s1577 + $0x28] sm:$0xf]
    %v1589 = vld [vmem:[%s1577 + $0x2c] sm:$0xf]
    %v1590 = vld [vmem:[%s1577 + $0x30] sm:$0xf]
    %v1591 = vld [vmem:[%s1577 + $0x34] sm:$0xf]
    %v1592 = vld [vmem:[%s1577 + $0x38] sm:$0xf]
    %v1593 = vld [vmem:[%s1577 + $0x3c] sm:$0xf]
    %v1610 = vunpack.c.l.b16 %v1578
    %v1611 = vunpack.c.l.b16 %v1579
    %v1612 = vunpack.c.l.b16 %v1580
    %v1613 = vunpack.c.l.b16 %v1581
    %v1614 = vunpack.c.l.b16 %v1582
    %v1615 = vunpack.c.l.b16 %v1583
    %v1616 = vunpack.c.l.b16 %v1584
    %v1617 = vunpack.c.l.b16 %v1585
    %v1618 = vunpack.c.l.b16 %v1586
    %v1619 = vunpack.c.l.b16 %v1587
    %v1620 = vunpack.c.l.b16 %v1588
    %v1621 = vunpack.c.l.b16 %v1589
    %v1622 = vunpack.c.l.b16 %v1590
    %v1623 = vunpack.c.l.b16 %v1591
    %v1624 = vunpack.c.l.b16 %v1592
    %v1625 = vunpack.c.l.b16 %v1593
    %v1626 = vpack.c.b16 %v1611, %v1610
    %v1627 = vpack.c.b16 %v1613, %v1612
    %v1628 = vpack.c.b16 %v1615, %v1614
    %v1629 = vpack.c.b16 %v1617, %v1616
    %v1630 = vpack.c.b16 %v1619, %v1618
    %v1631 = vpack.c.b16 %v1621, %v1620
    %v1632 = vpack.c.b16 %v1623, %v1622
    %v1633 = vpack.c.b16 %v1625, %v1624
    %1642 = vmatprep.subr.bf16.mxu0 0
    %1643 = vmatpush1.bf16.msra.mxu0 %v1576
    %1644 = vmatprep.subr.bf16.mxu0 0
    %1645 = vmatpush1.bf16.msra.mxu0 %v1575
    %1646 = vmatprep.subr.bf16.mxu0 0
    %1647 = vmatpush1.bf16.msra.mxu0 %v1574
    %1648 = vmatprep.subr.bf16.mxu0 0
    %1649 = vmatpush1.bf16.msra.mxu0 %v1573
    %1650 = vmatprep.subr.bf16.mxu0 0
    %1651 = vmatpush1.bf16.msra.mxu0 %v1572
    %1652 = vmatprep.subr.bf16.mxu0 0
    %1653 = vmatpush1.bf16.msra.mxu0 %v1571
    %1654 = vmatprep.subr.bf16.mxu0 0
    %1655 = vmatpush1.bf16.msra.mxu0 %v1570
    %1656 = vmatprep.subr.bf16.mxu0 0
    %1657 = vmatpush1.bf16.msra.mxu0 %v1569
    %1658 = vmatprep.subr.bf16.mxu0 0
    %1659 = vmatpush2.bf16.msra.mxu0 0
    %1660 = vmatprep.subr.bf16.mxu0 0
    %1661 = vmatpush2.bf16.msra.mxu0 0
    %1662 = vmatprep.subr.bf16.mxu0 0
    %1663 = vmatpush2.bf16.msra.mxu0 0
    %1664 = vmatprep.subr.bf16.mxu0 0
    %1665 = vmatpush2.bf16.msra.mxu0 0
    %1666 = vmatprep.subr.bf16.mxu0 0
    %1667 = vmatpush2.bf16.msra.mxu0 0
    %1668 = vmatprep.subr.bf16.mxu0 0
    %1669 = vmatpush2.bf16.msra.mxu0 0
    %1670 = vmatprep.subr.bf16.mxu0 0
    %1671 = vmatpush2.bf16.msra.mxu0 0
    %1672 = vmatprep.subr.bf16.mxu0 0
    %1673 = vmatpush2.bf16.msra.mxu0 0
    %1674 = vmatprep.mubr.bf16.mxu0 0
    %1675 = vmatmul.mubr.bf16.gmra.mxu0 %v1626
    %v1676 = vpop.f32.mrf.mxu0
    %v1677 = vadd.f32 0.0, %v1676
    %v1678 = vpop.f32.mrf.mxu0
    %v1679 = vpop.f32.mrf.mxu0
    %v1680 = vadd.f32 0.0, %v1679
    %v1681 = vpop.f32.mrf.mxu0
    %1682 = vmatprep.mubr.bf16.mxu0 0
    %1683 = vmatmul.mubr.bf16.gmra.mxu0 %v1627
    %v1684 = vpop.f32.mrf.mxu0
    %v1685 = vadd.f32 0.0, %v1684
    %v1686 = vpop.f32.mrf.mxu0
    %v1687 = vpop.f32.mrf.mxu0
    %v1688 = vadd.f32 0.0, %v1687
    %v1689 = vpop.f32.mrf.mxu0
    %1690 = vmatprep.mubr.bf16.mxu0 0
    %1691 = vmatmul.mubr.bf16.gmra.mxu0 %v1628
    %v1692 = vpop.f32.mrf.mxu0
    %v1693 = vadd.f32 0.0, %v1692
    %v1694 = vpop.f32.mrf.mxu0
    %v1695 = vpop.f32.mrf.mxu0
    %v1696 = vadd.f32 0.0, %v1695
    %v1697 = vpop.f32.mrf.mxu0
    %1698 = vmatprep.mubr.bf16.mxu0 0
    %1699 = vmatmul.mubr.bf16.gmra.mxu0 %v1629
    %v1700 = vpop.f32.mrf.mxu0
    %v1701 = vadd.f32 0.0, %v1700
    %v1702 = vpop.f32.mrf.mxu0
    %v1703 = vpop.f32.mrf.mxu0
    %v1704 = vadd.f32 0.0, %v1703
    %v1705 = vpop.f32.mrf.mxu0
    %1706 = vmatprep.mubr.bf16.mxu0 0
    %1707 = vmatmul.mubr.bf16.gmra.mxu0 %v1630
    %v1708 = vpop.f32.mrf.mxu0
    %v1709 = vadd.f32 0.0, %v1708
    %v1710 = vpop.f32.mrf.mxu0
    %v1711 = vpop.f32.mrf.mxu0
    %v1712 = vadd.f32 0.0, %v1711
    %v1713 = vpop.f32.mrf.mxu0
    %1714 = vmatprep.mubr.bf16.mxu0 0
    %1715 = vmatmul.mubr.bf16.gmra.mxu0 %v1631
    %v1716 = vpop.f32.mrf.mxu0
    %v1717 = vadd.f32 0.0, %v1716
    %v1718 = vpop.f32.mrf.mxu0
    %v1719 = vpop.f32.mrf.mxu0
    %v1720 = vadd.f32 0.0, %v1719
    %v1721 = vpop.f32.mrf.mxu0
    %1722 = vmatprep.mubr.bf16.mxu0 0
    %1723 = vmatmul.mubr.bf16.gmra.mxu0 %v1632
    %v1724 = vpop.f32.mrf.mxu0
    %v1725 = vadd.f32 0.0, %v1724
    %v1726 = vpop.f32.mrf.mxu0
    %v1727 = vpop.f32.mrf.mxu0
    %v1728 = vadd.f32 0.0, %v1727
    %v1729 = vpop.f32.mrf.mxu0
    %1730 = vmatprep.mubr.bf16.mxu0 0
    %1731 = vmatmul.mubr.bf16.gmra.mxu0 %v1633
    %v1732 = vpop.f32.mrf.mxu0
    %v1733 = vadd.f32 0.0, %v1732
    %v1734 = vpop.f32.mrf.mxu0
    %v1735 = vpop.f32.mrf.mxu0
    %v1736 = vadd.f32 0.0, %v1735
    %v1737 = vpop.f32.mrf.mxu0
    %1738 = vdwg.mxu0
    %v1739 = vmax.f32 %v1677, 0.0
    %v1740 = vmax.f32 %v1680, 0.0
    %v1741 = vmax.f32 %v1685, 0.0
    %v1742 = vmax.f32 %v1688, 0.0
    %v1743 = vmax.f32 %v1693, 0.0
    %v1744 = vmax.f32 %v1696, 0.0
    %v1745 = vmax.f32 %v1701, 0.0
    %v1746 = vmax.f32 %v1704, 0.0
    %v1747 = vmax.f32 %v1709, 0.0
    %v1748 = vmax.f32 %v1712, 0.0
    %v1749 = vmax.f32 %v1717, 0.0
    %v1750 = vmax.f32 %v1720, 0.0
    %v1751 = vmax.f32 %v1725, 0.0
    %v1752 = vmax.f32 %v1728, 0.0
    %v1753 = vmax.f32 %v1733, 0.0
    %v1754 = vmax.f32 %v1736, 0.0
    %v1755 = vpack.c.bf16 %v1740, %v1739
    %v1756 = vpack.c.bf16 %v1742, %v1741
    %v1757 = vpack.c.bf16 %v1744, %v1743
    %v1758 = vpack.c.bf16 %v1746, %v1745
    %v1759 = vpack.c.bf16 %v1748, %v1747
    %v1760 = vpack.c.bf16 %v1750, %v1749
    %v1761 = vpack.c.bf16 %v1752, %v1751
    %v1762 = vpack.c.bf16 %v1754, %v1753
    %s1763 = scalar_lea.vmem [#allocation2], 576
    %v1764 = vld [vmem:[%s1763] sm:$0xf]
    %v1765 = vld [vmem:[%s1763 + $0x4] sm:$0xf]
    %v1766 = vld [vmem:[%s1763 + $0x8] sm:$0xf]
    %v1767 = vld [vmem:[%s1763 + $0xc] sm:$0xf]
    %v1768 = vld [vmem:[%s1763 + $0x10] sm:$0xf]
    %v1769 = vld [vmem:[%s1763 + $0x14] sm:$0xf]
    %v1770 = vld [vmem:[%s1763 + $0x18] sm:$0xf]
    %v1771 = vld [vmem:[%s1763 + $0x1c] sm:$0xf]
    %v1772 = vld [vmem:[%s1763 + $0x20] sm:$0xf]
    %v1773 = vld [vmem:[%s1763 + $0x24] sm:$0xf]
    %v1774 = vld [vmem:[%s1763 + $0x28] sm:$0xf]
    %v1775 = vld [vmem:[%s1763 + $0x2c] sm:$0xf]
    %v1776 = vld [vmem:[%s1763 + $0x30] sm:$0xf]
    %v1777 = vld [vmem:[%s1763 + $0x34] sm:$0xf]
    %v1778 = vld [vmem:[%s1763 + $0x38] sm:$0xf]
    %v1779 = vld [vmem:[%s1763 + $0x3c] sm:$0xf]
    %v1796 = vunpack.c.l.b16 %v1764
    %v1797 = vunpack.c.l.b16 %v1765
    %v1798 = vunpack.c.l.b16 %v1766
    %v1799 = vunpack.c.l.b16 %v1767
    %v1800 = vunpack.c.l.b16 %v1768
    %v1801 = vunpack.c.l.b16 %v1769
    %v1802 = vunpack.c.l.b16 %v1770
    %v1803 = vunpack.c.l.b16 %v1771
    %v1804 = vunpack.c.l.b16 %v1772
    %v1805 = vunpack.c.l.b16 %v1773
    %v1806 = vunpack.c.l.b16 %v1774
    %v1807 = vunpack.c.l.b16 %v1775
    %v1808 = vunpack.c.l.b16 %v1776
    %v1809 = vunpack.c.l.b16 %v1777
    %v1810 = vunpack.c.l.b16 %v1778
    %v1811 = vunpack.c.l.b16 %v1779
    %v1812 = vpack.c.b16 %v1797, %v1796
    %v1813 = vpack.c.b16 %v1799, %v1798
    %v1814 = vpack.c.b16 %v1801, %v1800
    %v1815 = vpack.c.b16 %v1803, %v1802
    %v1816 = vpack.c.b16 %v1805, %v1804
    %v1817 = vpack.c.b16 %v1807, %v1806
    %v1818 = vpack.c.b16 %v1809, %v1808
    %v1819 = vpack.c.b16 %v1811, %v1810
    %1828 = vmatprep.subr.bf16.mxu0 0
    %1829 = vmatpush1.bf16.msra.mxu0 %v1762
    %1830 = vmatprep.subr.bf16.mxu0 0
    %1831 = vmatpush1.bf16.msra.mxu0 %v1761
    %1832 = vmatprep.subr.bf16.mxu0 0
    %1833 = vmatpush1.bf16.msra.mxu0 %v1760
    %1834 = vmatprep.subr.bf16.mxu0 0
    %1835 = vmatpush1.bf16.msra.mxu0 %v1759
    %1836 = vmatprep.subr.bf16.mxu0 0
    %1837 = vmatpush1.bf16.msra.mxu0 %v1758
    %1838 = vmatprep.subr.bf16.mxu0 0
    %1839 = vmatpush1.bf16.msra.mxu0 %v1757
    %1840 = vmatprep.subr.bf16.mxu0 0
    %1841 = vmatpush1.bf16.msra.mxu0 %v1756
    %1842 = vmatprep.subr.bf16.mxu0 0
    %1843 = vmatpush1.bf16.msra.mxu0 %v1755
    %1844 = vmatprep.subr.bf16.mxu0 0
    %1845 = vmatpush2.bf16.msra.mxu0 0
    %1846 = vmatprep.subr.bf16.mxu0 0
    %1847 = vmatpush2.bf16.msra.mxu0 0
    %1848 = vmatprep.subr.bf16.mxu0 0
    %1849 = vmatpush2.bf16.msra.mxu0 0
    %1850 = vmatprep.subr.bf16.mxu0 0
    %1851 = vmatpush2.bf16.msra.mxu0 0
    %1852 = vmatprep.subr.bf16.mxu0 0
    %1853 = vmatpush2.bf16.msra.mxu0 0
    %1854 = vmatprep.subr.bf16.mxu0 0
    %1855 = vmatpush2.bf16.msra.mxu0 0
    %1856 = vmatprep.subr.bf16.mxu0 0
    %1857 = vmatpush2.bf16.msra.mxu0 0
    %1858 = vmatprep.subr.bf16.mxu0 0
    %1859 = vmatpush2.bf16.msra.mxu0 0
    %1860 = vmatprep.mubr.bf16.mxu0 0
    %1861 = vmatmul.mubr.bf16.gmra.mxu0 %v1812
    %v1862 = vpop.f32.mrf.mxu0
    %v1863 = vadd.f32 0.0, %v1862
    %v1864 = vpop.f32.mrf.mxu0
    %v1865 = vpop.f32.mrf.mxu0
    %v1866 = vadd.f32 0.0, %v1865
    %v1867 = vpop.f32.mrf.mxu0
    %1868 = vmatprep.mubr.bf16.mxu0 0
    %1869 = vmatmul.mubr.bf16.gmra.mxu0 %v1813
    %v1870 = vpop.f32.mrf.mxu0
    %v1871 = vadd.f32 0.0, %v1870
    %v1872 = vpop.f32.mrf.mxu0
    %v1873 = vpop.f32.mrf.mxu0
    %v1874 = vadd.f32 0.0, %v1873
    %v1875 = vpop.f32.mrf.mxu0
    %1876 = vmatprep.mubr.bf16.mxu0 0
    %1877 = vmatmul.mubr.bf16.gmra.mxu0 %v1814
    %v1878 = vpop.f32.mrf.mxu0
    %v1879 = vadd.f32 0.0, %v1878
    %v1880 = vpop.f32.mrf.mxu0
    %v1881 = vpop.f32.mrf.mxu0
    %v1882 = vadd.f32 0.0, %v1881
    %v1883 = vpop.f32.mrf.mxu0
    %1884 = vmatprep.mubr.bf16.mxu0 0
    %1885 = vmatmul.mubr.bf16.gmra.mxu0 %v1815
    %v1886 = vpop.f32.mrf.mxu0
    %v1887 = vadd.f32 0.0, %v1886
    %v1888 = vpop.f32.mrf.mxu0
    %v1889 = vpop.f32.mrf.mxu0
    %v1890 = vadd.f32 0.0, %v1889
    %v1891 = vpop.f32.mrf.mxu0
    %1892 = vmatprep.mubr.bf16.mxu0 0
    %1893 = vmatmul.mubr.bf16.gmra.mxu0 %v1816
    %v1894 = vpop.f32.mrf.mxu0
    %v1895 = vadd.f32 0.0, %v1894
    %v1896 = vpop.f32.mrf.mxu0
    %v1897 = vpop.f32.mrf.mxu0
    %v1898 = vadd.f32 0.0, %v1897
    %v1899 = vpop.f32.mrf.mxu0
    %1900 = vmatprep.mubr.bf16.mxu0 0
    %1901 = vmatmul.mubr.bf16.gmra.mxu0 %v1817
    %v1902 = vpop.f32.mrf.mxu0
    %v1903 = vadd.f32 0.0, %v1902
    %v1904 = vpop.f32.mrf.mxu0
    %v1905 = vpop.f32.mrf.mxu0
    %v1906 = vadd.f32 0.0, %v1905
    %v1907 = vpop.f32.mrf.mxu0
    %1908 = vmatprep.mubr.bf16.mxu0 0
    %1909 = vmatmul.mubr.bf16.gmra.mxu0 %v1818
    %v1910 = vpop.f32.mrf.mxu0
    %v1911 = vadd.f32 0.0, %v1910
    %v1912 = vpop.f32.mrf.mxu0
    %v1913 = vpop.f32.mrf.mxu0
    %v1914 = vadd.f32 0.0, %v1913
    %v1915 = vpop.f32.mrf.mxu0
    %1916 = vmatprep.mubr.bf16.mxu0 0
    %1917 = vmatmul.mubr.bf16.gmra.mxu0 %v1819
    %v1918 = vpop.f32.mrf.mxu0
    %v1919 = vadd.f32 0.0, %v1918
    %v1920 = vpop.f32.mrf.mxu0
    %v1921 = vpop.f32.mrf.mxu0
    %v1922 = vadd.f32 0.0, %v1921
    %v1923 = vpop.f32.mrf.mxu0
    %1924 = vdwg.mxu0
    %v1925 = vmax.f32 %v1863, 0.0
    %v1926 = vmax.f32 %v1866, 0.0
    %v1927 = vmax.f32 %v1871, 0.0
    %v1928 = vmax.f32 %v1874, 0.0
    %v1929 = vmax.f32 %v1879, 0.0
    %v1930 = vmax.f32 %v1882, 0.0
    %v1931 = vmax.f32 %v1887, 0.0
    %v1932 = vmax.f32 %v1890, 0.0
    %v1933 = vmax.f32 %v1895, 0.0
    %v1934 = vmax.f32 %v1898, 0.0
    %v1935 = vmax.f32 %v1903, 0.0
    %v1936 = vmax.f32 %v1906, 0.0
    %v1937 = vmax.f32 %v1911, 0.0
    %v1938 = vmax.f32 %v1914, 0.0
    %v1939 = vmax.f32 %v1919, 0.0
    %v1940 = vmax.f32 %v1922, 0.0
    %v1941 = vpack.c.bf16 %v1926, %v1925
    %v1942 = vpack.c.bf16 %v1928, %v1927
    %v1943 = vpack.c.bf16 %v1930, %v1929
    %v1944 = vpack.c.bf16 %v1932, %v1931
    %v1945 = vpack.c.bf16 %v1934, %v1933
    %v1946 = vpack.c.bf16 %v1936, %v1935
    %v1947 = vpack.c.bf16 %v1938, %v1937
    %v1948 = vpack.c.bf16 %v1940, %v1939
    %s1949 = scalar_lea.vmem [#allocation2], 640
    %v1950 = vld [vmem:[%s1949] sm:$0xf]
    %v1951 = vld [vmem:[%s1949 + $0x4] sm:$0xf]
    %v1952 = vld [vmem:[%s1949 + $0x8] sm:$0xf]
    %v1953 = vld [vmem:[%s1949 + $0xc] sm:$0xf]
    %v1954 = vld [vmem:[%s1949 + $0x10] sm:$0xf]
    %v1955 = vld [vmem:[%s1949 + $0x14] sm:$0xf]
    %v1956 = vld [vmem:[%s1949 + $0x18] sm:$0xf]
    %v1957 = vld [vmem:[%s1949 + $0x1c] sm:$0xf]
    %v1958 = vld [vmem:[%s1949 + $0x20] sm:$0xf]
    %v1959 = vld [vmem:[%s1949 + $0x24] sm:$0xf]
    %v1960 = vld [vmem:[%s1949 + $0x28] sm:$0xf]
    %v1961 = vld [vmem:[%s1949 + $0x2c] sm:$0xf]
    %v1962 = vld [vmem:[%s1949 + $0x30] sm:$0xf]
    %v1963 = vld [vmem:[%s1949 + $0x34] sm:$0xf]
    %v1964 = vld [vmem:[%s1949 + $0x38] sm:$0xf]
    %v1965 = vld [vmem:[%s1949 + $0x3c] sm:$0xf]
    %v1982 = vunpack.c.l.b16 %v1950
    %v1983 = vunpack.c.l.b16 %v1951
    %v1984 = vunpack.c.l.b16 %v1952
    %v1985 = vunpack.c.l.b16 %v1953
    %v1986 = vunpack.c.l.b16 %v1954
    %v1987 = vunpack.c.l.b16 %v1955
    %v1988 = vunpack.c.l.b16 %v1956
    %v1989 = vunpack.c.l.b16 %v1957
    %v1990 = vunpack.c.l.b16 %v1958
    %v1991 = vunpack.c.l.b16 %v1959
    %v1992 = vunpack.c.l.b16 %v1960
    %v1993 = vunpack.c.l.b16 %v1961
    %v1994 = vunpack.c.l.b16 %v1962
    %v1995 = vunpack.c.l.b16 %v1963
    %v1996 = vunpack.c.l.b16 %v1964
    %v1997 = vunpack.c.l.b16 %v1965
    %v1998 = vpack.c.b16 %v1983, %v1982
    %v1999 = vpack.c.b16 %v1985, %v1984
    %v2000 = vpack.c.b16 %v1987, %v1986
    %v2001 = vpack.c.b16 %v1989, %v1988
    %v2002 = vpack.c.b16 %v1991, %v1990
    %v2003 = vpack.c.b16 %v1993, %v1992
    %v2004 = vpack.c.b16 %v1995, %v1994
    %v2005 = vpack.c.b16 %v1997, %v1996
    %2014 = vmatprep.subr.bf16.mxu0 0
    %2015 = vmatpush1.bf16.msra.mxu0 %v1948
    %2016 = vmatprep.subr.bf16.mxu0 0
    %2017 = vmatpush1.bf16.msra.mxu0 %v1947
    %2018 = vmatprep.subr.bf16.mxu0 0
    %2019 = vmatpush1.bf16.msra.mxu0 %v1946
    %2020 = vmatprep.subr.bf16.mxu0 0
    %2021 = vmatpush1.bf16.msra.mxu0 %v1945
    %2022 = vmatprep.subr.bf16.mxu0 0
    %2023 = vmatpush1.bf16.msra.mxu0 %v1944
    %2024 = vmatprep.subr.bf16.mxu0 0
    %2025 = vmatpush1.bf16.msra.mxu0 %v1943
    %2026 = vmatprep.subr.bf16.mxu0 0
    %2027 = vmatpush1.bf16.msra.mxu0 %v1942
    %2028 = vmatprep.subr.bf16.mxu0 0
    %2029 = vmatpush1.bf16.msra.mxu0 %v1941
    %2030 = vmatprep.subr.bf16.mxu0 0
    %2031 = vmatpush2.bf16.msra.mxu0 0
    %2032 = vmatprep.subr.bf16.mxu0 0
    %2033 = vmatpush2.bf16.msra.mxu0 0
    %2034 = vmatprep.subr.bf16.mxu0 0
    %2035 = vmatpush2.bf16.msra.mxu0 0
    %2036 = vmatprep.subr.bf16.mxu0 0
    %2037 = vmatpush2.bf16.msra.mxu0 0
    %2038 = vmatprep.subr.bf16.mxu0 0
    %2039 = vmatpush2.bf16.msra.mxu0 0
    %2040 = vmatprep.subr.bf16.mxu0 0
    %2041 = vmatpush2.bf16.msra.mxu0 0
    %2042 = vmatprep.subr.bf16.mxu0 0
    %2043 = vmatpush2.bf16.msra.mxu0 0
    %2044 = vmatprep.subr.bf16.mxu0 0
    %2045 = vmatpush2.bf16.msra.mxu0 0
    %2046 = vmatprep.mubr.bf16.mxu0 0
    %2047 = vmatmul.mubr.bf16.gmra.mxu0 %v1998
    %v2048 = vpop.f32.mrf.mxu0
    %v2049 = vadd.f32 0.0, %v2048
    %v2050 = vpop.f32.mrf.mxu0
    %v2051 = vpop.f32.mrf.mxu0
    %v2052 = vpop.f32.mrf.mxu0
    %2053 = vmatprep.mubr.bf16.mxu0 0
    %2054 = vmatmul.mubr.bf16.gmra.mxu0 %v1999
    %v2055 = vpop.f32.mrf.mxu0
    %v2056 = vpop.f32.mrf.mxu0
    %v2057 = vpop.f32.mrf.mxu0
    %v2058 = vpop.f32.mrf.mxu0
    %2059 = vmatprep.mubr.bf16.mxu0 0
    %2060 = vmatmul.mubr.bf16.gmra.mxu0 %v2000
    %v2061 = vpop.f32.mrf.mxu0
    %v2062 = vpop.f32.mrf.mxu0
    %v2063 = vpop.f32.mrf.mxu0
    %v2064 = vpop.f32.mrf.mxu0
    %2065 = vmatprep.mubr.bf16.mxu0 0
    %2066 = vmatmul.mubr.bf16.gmra.mxu0 %v2001
    %v2067 = vpop.f32.mrf.mxu0
    %v2068 = vpop.f32.mrf.mxu0
    %v2069 = vpop.f32.mrf.mxu0
    %v2070 = vpop.f32.mrf.mxu0
    %2071 = vmatprep.mubr.bf16.mxu0 0
    %2072 = vmatmul.mubr.bf16.gmra.mxu0 %v2002
    %v2073 = vpop.f32.mrf.mxu0
    %v2074 = vpop.f32.mrf.mxu0
    %v2075 = vpop.f32.mrf.mxu0
    %v2076 = vpop.f32.mrf.mxu0
    %2077 = vmatprep.mubr.bf16.mxu0 0
    %2078 = vmatmul.mubr.bf16.gmra.mxu0 %v2003
    %v2079 = vpop.f32.mrf.mxu0
    %v2080 = vpop.f32.mrf.mxu0
    %v2081 = vpop.f32.mrf.mxu0
    %v2082 = vpop.f32.mrf.mxu0
    %2083 = vmatprep.mubr.bf16.mxu0 0
    %2084 = vmatmul.mubr.bf16.gmra.mxu0 %v2004
    %v2085 = vpop.f32.mrf.mxu0
    %v2086 = vpop.f32.mrf.mxu0
    %v2087 = vpop.f32.mrf.mxu0
    %v2088 = vpop.f32.mrf.mxu0
    %2089 = vmatprep.mubr.bf16.mxu0 0
    %2090 = vmatmul.mubr.bf16.gmra.mxu0 %v2005
    %v2091 = vpop.f32.mrf.mxu0
    %v2092 = vpop.f32.mrf.mxu0
    %v2093 = vpop.f32.mrf.mxu0
    %v2094 = vpop.f32.mrf.mxu0
    %2095 = vdwg.mxu0
    %2096 = vst [vmem:[%s2] sm:$0x1] %v2049
    // Predicated region
    $region14: #{neural_predictor_forward.1} parent=1 // pred_check
      _
    $region15: #{neural_predictor_forward.1} parent=1 // pred_check_branch
      %2098 = sbr.rel (0) target = $region17
    $region16: #{neural_predictor_forward.1} parent=1 // pred_region
      _
    $region17: #{neural_predictor_forward.1} parent=1 // pred_fallthru
      _
    // Predicated region
    $region18: #{neural_predictor_forward.1} parent=1 // pred_check
      _
    $region19: #{neural_predictor_forward.1} parent=1 // pred_check_branch
      %2100 = sbr.rel (0) target = $region21
    $region20: #{neural_predictor_forward.1} parent=1 // pred_region
      _
    $region21: #{neural_predictor_forward.1} parent=1 // pred_fallthru
      _
    %2101 = vsyncpa [#allocation3], 1

</llo_original>
